<compile_context>
chip_gen: v6e
topology: v6e:2x2x1
jax: 0.10.0
libtpu: 0.0.40
codegen_flags: <defaults>
</compile_context>

<pallas_src>
import functools

import jax
import jax.numpy as jnp
from jax.experimental import pallas as pl
from jax.experimental.pallas import tpu as pltpu


# ------------------------------- helpers ------------------------------------

def _round_up(x, m):
    return ((x + m - 1) // m) * m


def _cdiv(a, b):
    return (a + b - 1) // b


_LANES = 128           # lane width; minimum lane-dense output width
_K_RESIDENT_MAX = 4096  # keep whole K resident (single K step) up to this
_K_TILE = 1024          # K tile when input_dim is large (K-axis accumulation)


def _choose_tk(input_dim):
    """Reduction tile: whole K when small, 1024-wide tiles when large."""
    if input_dim <= _K_RESIDENT_MAX:
        return input_dim
    return _K_TILE


# ----------------------------- Pallas kernel ---------------------------------

def _linear_kernel(x_ref, w_ref, b_ref, o_ref, acc_ref):
    # x_ref:   (tm, tk)      one (rows, K-chunk) tile of the input
    # w_ref:   (tk, N_pad)   weight tile (resident when there is 1 K step)
    # b_ref:   (1,  N_pad)   bias, resident
    # o_ref:   (tm, N_pad)   output tile
    # acc_ref: (tm, N_pad)   f32 accumulator scratch (carried across K steps)
    k = pl.program_id(1)

    @pl.when(k == 0)
    def _():
        acc_ref[...] = jnp.zeros_like(acc_ref)

    acc_ref[...] += jnp.dot(x_ref[...], w_ref[...],
                            preferred_element_type=jnp.float32)

    @pl.when(k == pl.num_programs(1) - 1)
    def _():
        o_ref[...] = (acc_ref[...] + b_ref[...]).astype(o_ref.dtype)


# ------------------------------- wrappers ------------------------------------

def prepare_params(weight, bias=None):
    """One-time padding/layout of nn.Linear params (do this at model init).

    weight: (n_classes, input_dim)  -- PyTorch nn.Linear layout
    bias:   (n_classes,) or None
    Returns w_p: (K_pad, N_pad) f32, b_p: (1, N_pad) f32 (zero-padded).
    """
    n_classes, input_dim = weight.shape
    tk = _choose_tk(input_dim)
    K_pad = _round_up(input_dim, tk)
    N_pad = _round_up(n_classes, _LANES)

    w_p = jnp.zeros((K_pad, N_pad), jnp.float32)
    w_p = w_p.at[:input_dim, :n_classes].set(weight.T.astype(jnp.float32))
    b_p = jnp.zeros((1, N_pad), jnp.float32)
    if bias is not None:
        b_p = b_p.at[0, :n_classes].set(bias.astype(jnp.float32))
    return w_p, b_p


@functools.partial(jax.jit, static_argnames=("n_classes", "tile_m"))
def linear_classifier_forward(x, w_p, b_p, *, n_classes, tile_m=512):
    """y = x @ W.T + b using pre-padded params from prepare_params."""
    M, K = x.shape
    K_pad, N_pad = w_p.shape
    tk = _choose_tk(K)
    num_k = K_pad // tk

    # Row tile: large (amortizes per-step overhead) but keep >= 2 M-steps when
    # possible so v7x's second TensorCore gets a share of the grid.
    tm = min(tile_m, max(8, _round_up(_cdiv(M, 2), 8)))
    M_pad = _round_up(M, tm)

    x_p = x.astype(jnp.float32)
    if M_pad != M or K_pad != K:
        x_p = jnp.pad(x_p, ((0, M_pad - M), (0, K_pad - K)))

    # Constant-index (resident) blocks only need one VMEM buffer.
    if num_k == 1:
        w_spec = pl.BlockSpec((tk, N_pad), lambda i, k: (k, 0),
                              pipeline_mode=pl.Buffered(1))
        w_bufs = 1
    else:
        w_spec = pl.BlockSpec((tk, N_pad), lambda i, k: (k, 0))
        w_bufs = 2
    b_spec = pl.BlockSpec((1, N_pad), lambda i, k: (0, 0),
                          pipeline_mode=pl.Buffered(1))

    itemsize = 4
    vmem_bytes = (2 * tm * tk              # double-buffered x tiles
                  + w_bufs * tk * N_pad    # weight tile(s)
                  + N_pad                  # bias
                  + 2 * tm * N_pad         # double-buffered output tiles
                  + tm * N_pad             # accumulator scratch
                  ) * itemsize
    vmem_limit = max(vmem_bytes + (4 << 20), 16 << 20)

    cost = pl.CostEstimate(
        flops=2 * M_pad * K_pad * N_pad,
        transcendentals=0,
        bytes_accessed=(M_pad * K_pad + K_pad * N_pad + N_pad
                        + M_pad * N_pad) * itemsize,
    )

    out = pl.pallas_call(
        _linear_kernel,
        out_shape=jax.ShapeDtypeStruct((M_pad, N_pad), jnp.float32),
        grid=(M_pad // tm, num_k),
        in_specs=[
            pl.BlockSpec((tm, tk), lambda i, k: (i, k)),   # stream x tiles
            w_spec,                                         # weights
            b_spec,                                         # bias
        ],
        out_specs=pl.BlockSpec((tm, N_pad), lambda i, k: (i, 0)),
        scratch_shapes=[pltpu.VMEM((tm, N_pad), jnp.float32)],
        compiler_params=pltpu.CompilerParams(
            dimension_semantics=("parallel", "arbitrary"),
            vmem_limit_bytes=vmem_limit,
        ),
        cost_estimate=cost,
    )(x_p, w_p, b_p)

    return out[:M, :n_classes]


# ----------------------------------- main ------------------------------------

if __name__ == "__main__":
    B, input_dim, n_classes = 512, 784, 10   # 2 row-tiles of 256 rows each
    key = jax.random.PRNGKey(0)
    kx, kw, kb = jax.random.split(key, 3)

    x = jax.random.normal(kx, (B, input_dim), jnp.float32)
    # PyTorch nn.Linear layout: weight (n_classes, input_dim), bias (n_classes,)
    w_t = 0.05 * jax.random.normal(kw, (n_classes, input_dim), jnp.float32)
    b_t = 0.05 * jax.random.normal(kb, (n_classes,), jnp.float32)

    # Pad/layout params once (init time), then run the forward.
    w_p, b_p = prepare_params(w_t, b_t)
    out = linear_classifier_forward(x, w_p, b_p, n_classes=n_classes)
    out = jax.block_until_ready(out)
    assert out.shape == (B, n_classes), out.shape
    assert bool(jnp.all(jnp.isfinite(out)))

    # Pure-JAX reference of the PyTorch forward: res = s @ W.T + b
    ref = jnp.dot(x, w_t.T, precision=jax.lax.Precision.HIGHEST) + b_t
    assert jnp.allclose(out, ref, rtol=1e-4, atol=1e-4), \
        float(jnp.max(jnp.abs(out - ref)))

    print("KERNEL_OK")
</pallas_src>

<mosaic_0001>
module attributes {stable_mosaic.version = 11 : i64} {
  func.func @_linear_kernel(%arg0: i32, %arg1: i32, %arg2: memref<256x784xf32, #tpu.memory_space<vmem>>, %arg3: memref<784x128xf32, #tpu.memory_space<vmem>>, %arg4: memref<1x128xf32, #tpu.memory_space<vmem>>, %arg5: memref<256x128xf32, #tpu.memory_space<vmem>>, %arg6: memref<256x128xf32, #tpu.memory_space<vmem>>) attributes {dimension_semantics = [#tpu.dimension_semantics<parallel>, #tpu.dimension_semantics<arbitrary>], iteration_bounds = array<i64: 2, 1>, scalar_prefetch = 0 : i64, scratch_operands = 1 : i64, tpu.core_type = #tpu.core_type<tc>, window_params = [{transform_indices = @transform_0, window_bounds = array<i64: 256, 784>}, {pipeline_mode = #tpu.pipeline_mode<synchronous>, transform_indices = @transform_1, window_bounds = array<i64: 784, 128>}, {pipeline_mode = #tpu.pipeline_mode<synchronous>, transform_indices = @transform_2, window_bounds = array<i64: 1, 128>}, {transform_indices = @transform_3, window_bounds = array<i64: 256, 128>}]} {
    %c0_i32 = arith.constant 0 : i32
    %0 = arith.cmpi eq, %arg1, %c0_i32 : i32
    %1 = arith.extui %0 : i1 to i32
    %c0_i32_0 = arith.constant 0 : i32
    %2 = arith.cmpi ne, %1, %c0_i32_0 : i32
    scf.if %2 {
      %cst_10 = arith.constant 0.000000e+00 : f32
      %12 = vector.broadcast %cst_10 : f32 to vector<256x128xf32>
      %c0_11 = arith.constant 0 : index
      %c0_12 = arith.constant 0 : index
      %13 = vector.load %arg6[%c0_11, %c0_12] : memref<256x128xf32, #tpu.memory_space<vmem>>, vector<256x128xf32>
      tpu.vector_store %arg6[%c0_11, %c0_12], %12 {strides = array<i32>} : memref<256x128xf32, #tpu.memory_space<vmem>>, vector<256x128xf32>,
    } else {
    }
    %c0 = arith.constant 0 : index
    %c0_1 = arith.constant 0 : index
    %3 = vector.load %arg6[%c0, %c0_1] : memref<256x128xf32, #tpu.memory_space<vmem>>, vector<256x128xf32>
    %c0_2 = arith.constant 0 : index
    %c0_3 = arith.constant 0 : index
    %4 = vector.load %arg2[%c0_2, %c0_3] : memref<256x784xf32, #tpu.memory_space<vmem>>, vector<256x784xf32>
    %c0_4 = arith.constant 0 : index
    %c0_5 = arith.constant 0 : index
    %5 = vector.load %arg3[%c0_4, %c0_5] : memref<784x128xf32, #tpu.memory_space<vmem>>, vector<784x128xf32>
    %cst = arith.constant dense<0.000000e+00> : vector<256x128xf32>
    %6 = tpu.matmul %4, %5, %cst {dimension_numbers = #tpu.dot_dimension_numbers<[1], [0], [0], [1], [0, 0, 1, 1], [], []>} : vector<256x784xf32>, vector<784x128xf32>, vector<256x128xf32> -> vector<256x128xf32>
    %7 = arith.addf %3, %6 : vector<256x128xf32>
    %c0_6 = arith.constant 0 : index
    %c0_7 = arith.constant 0 : index
    %8 = vector.load %arg6[%c0_6, %c0_7] : memref<256x128xf32, #tpu.memory_space<vmem>>, vector<256x128xf32>
    tpu.vector_store %arg6[%c0_6, %c0_7], %7 {strides = array<i32>} : memref<256x128xf32, #tpu.memory_space<vmem>>, vector<256x128xf32>,
    %c0_i32_8 = arith.constant 0 : i32
    %9 = arith.cmpi eq, %arg1, %c0_i32_8 : i32
    %10 = arith.extui %9 : i1 to i32
    %c0_i32_9 = arith.constant 0 : i32
    %11 = arith.cmpi ne, %10, %c0_i32_9 : i32
    scf.if %11 {
      %c0_10 = arith.constant 0 : index
      %c0_11 = arith.constant 0 : index
      %12 = vector.load %arg6[%c0_10, %c0_11] : memref<256x128xf32, #tpu.memory_space<vmem>>, vector<256x128xf32>
      %c0_12 = arith.constant 0 : index
      %c0_13 = arith.constant 0 : index
      %13 = vector.load %arg4[%c0_12, %c0_13] : memref<1x128xf32, #tpu.memory_space<vmem>>, vector<1x128xf32>
      %14 = vector.broadcast %13 : vector<1x128xf32> to vector<256x128xf32>
      %15 = arith.addf %12, %14 : vector<256x128xf32>
      %c0_14 = arith.constant 0 : index
      %c0_15 = arith.constant 0 : index
      %16 = vector.load %arg5[%c0_14, %c0_15] : memref<256x128xf32, #tpu.memory_space<vmem>>, vector<256x128xf32>
      tpu.vector_store %arg5[%c0_14, %c0_15], %15 {strides = array<i32>} : memref<256x128xf32, #tpu.memory_space<vmem>>, vector<256x128xf32>,
    } else {
    }
    return
  }
  func.func @transform_0(%arg0: i32, %arg1: i32) -> (i32, i32) {
    %c0_i32 = arith.constant 0 : i32
    return %arg0, %arg1 : i32, i32
  }
  func.func @transform_1(%arg0: i32, %arg1: i32) -> (i32, i32) {
    %c0_i32 = arith.constant 0 : i32
    %c0_i32_0 = arith.constant 0 : i32
    return %arg1, %c0_i32 : i32, i32
  }
  func.func @transform_2(%arg0: i32, %arg1: i32) -> (i32, i32) {
    %c0_i32 = arith.constant 0 : i32
    %c0_i32_0 = arith.constant 0 : i32
    %c0_i32_1 = arith.constant 0 : i32
    return %c0_i32, %c0_i32_0 : i32, i32
  }
  func.func @transform_3(%arg0: i32, %arg1: i32) -> (i32, i32) {
    %c0_i32 = arith.constant 0 : i32
    %c0_i32_0 = arith.constant 0 : i32
    return %arg0, %c0_i32 : i32, i32
  }
}

</mosaic_0001>

<llo_original>
// kernel: linear_classifier_forward.1
$region0: #{linear_classifier_forward.1}
  #allocation0 [shape = 'u32[]', space=smem, size = 0x4, offset = 0x4, fixed_abs, tag = 'smem constant byte address 0x4 - core index']
  #allocation1 [shape = 'u32[144,128]{1,0:T(1,128)}', space=vmem, size = 0x12000, scoped, tag = 'internal scratch']
  #allocation2 [shape = 'f32[256,128]{1,0:T(8,128)}', space=vmem, size = 0x20000, scoped, tag = 'scratch operand']
  %s0 = inlined_call_operand.vmem [shape: f32[512,784], index: 0, kind: input, shape index: {}]
  %s1 = inlined_call_operand.vmem [shape: f32[784,128], index: 1, kind: input, shape index: {}]
  %s2 = inlined_call_operand.vmem [shape: f32[1,128], index: 2, kind: input, shape index: {}]
  %s3 = inlined_call_operand.vmem [shape: f32[512,128], index: 3, kind: output, shape index: {}]
  %s4 = sld [smem:[#allocation0]]
  $region53: #{linear_classifier_forward.1} parent=0
    _
  %s6 = ssub.s32 1, %s4
  %s7 = scalar_select 0, %s6, %s4
  loop: start=0, step=1, limit=4
  $region2: #{linear_classifier_forward.1} parent=0 // loop_pre_header
    _
  $region3: #{linear_classifier_forward.1} parent=0 // loop_header
    %s9 = sphi 0, %s13
    %p10 = scmp.ge.s32.totalorder %s9, 4
    %s16 = sphi 0, %s28
    %s17 = sphi 0, %s24
    %s18 = sphi 0, %s16
    %s19 = sphi 0, %s17
    %s20 = sphi 0, %s18
    %s21 = sphi 0, %s19
    %s33 = sphi 0, %s35
    %s36 = sphi 0, %s33
    %s37 = sphi 0, %s36
    %s53 = sphi 0, %s37
    %s59 = sphi 0, %s61
    %s62 = sphi 0, %s59
    %s63 = sphi 0, %s62
    %s79 = sphi 0, %s63
    %s83 = sphi 0, %s83
    %s85 = sphi 0, %s83
    %s86 = sphi 0, %s85
    %s100 = sphi 0, %s86
    %s106 = sphi 0, %s108
    %s109 = sphi 0, %s106
    %s110 = sphi 0, %s109
    %s126 = sphi 0, %s110
  $region4: #{linear_classifier_forward.1} parent=0 // loop_header_branch
    %12 = sbr.rel (%p10) target = $region8
  $region5: #{linear_classifier_forward.1} parent=0 // loop_body
    %s14 = ssub.s32 %s9, 1
    %s15 = ssub.s32 %s9, 2
    %s22 = sadd.s32 1, %s17
    %p23 = scmp.ge.s32.totalorder %s22, 1
    %s24 = scalar_select %p23, 0, %s22
    %s25 = sadd.s32 1, %s16
    %s26 = scalar_select %p23, %s25, %s16
    %p27 = scmp.ge.s32.totalorder %s26, 2
    %s28 = scalar_select %p27, 0, %s26
    %s29 = ssub.s32 %s16, %s28
    %s30 = ssub.s32 %s17, %s24
    %s31 = sor.u32 %s29, %s30
    %p32 = scmp.eq.s32.totalorder %s31, 0
    %s34 = sadd.s32 %s33, 1
    %s35 = scalar_select %p32, %s33, %s34
    %p38 = pneg %p32
    %p39 = scmp.eq.s32.totalorder %s9, 1
    %p40 = por %p38, %p39
    %p41 = scmp.ne.s32.totalorder %s33, %s36
    %p42 = scmp.eq.s32.totalorder %s9, 0
    %p43 = por %p41, %p42
    %p44 = scmp.ne.s32.totalorder %s33, %s36
    %p45 = scmp.eq.s32.totalorder %s14, 1
    %p46 = por %p44, %p45
    %p47 = scmp.ne.s32.totalorder %s36, %s37
    %p48 = scmp.eq.s32.totalorder %s14, 0
    %p49 = por %p47, %p48
    %p50 = scmp.ne.s32.totalorder %s36, %s37
    %p51 = scmp.eq.s32.totalorder %s15, 1
    %p52 = por %p50, %p51
    %p54 = scmp.ne.s32.totalorder %s37, %s53
    %p55 = scmp.eq.s32.totalorder %s15, 0
    %p56 = por %p54, %p55
    %s57 = ssub.s32 %s17, %s24
    %p58 = scmp.eq.s32.totalorder %s57, 0
    %s60 = sadd.s32 %s59, 1
    %s61 = scalar_select %p58, %s59, %s60
    %p64 = pneg %p58
    %p65 = scmp.eq.s32.totalorder %s9, 1
    %p66 = por %p64, %p65
    %p67 = scmp.ne.s32.totalorder %s59, %s62
    %p68 = scmp.eq.s32.totalorder %s9, 0
    %p69 = por %p67, %p68
    %p70 = scmp.ne.s32.totalorder %s59, %s62
    %p71 = scmp.eq.s32.totalorder %s14, 1
    %p72 = por %p70, %p71
    %p73 = scmp.ne.s32.totalorder %s62, %s63
    %p74 = scmp.eq.s32.totalorder %s14, 0
    %p75 = por %p73, %p74
    %p76 = scmp.ne.s32.totalorder %s62, %s63
    %p77 = scmp.eq.s32.totalorder %s15, 1
    %p78 = por %p76, %p77
    %p80 = scmp.ne.s32.totalorder %s63, %s79
    %p81 = scmp.eq.s32.totalorder %s15, 0
    %p82 = por %p80, %p81
    %s84 = sadd.s32 %s83, 1
    %p87 = scmp.eq.s32.totalorder %s9, 1
    %p88 = scmp.ne.s32.totalorder %s83, %s85
    %p89 = scmp.eq.s32.totalorder %s9, 0
    %p90 = por %p88, %p89
    %p91 = scmp.ne.s32.totalorder %s83, %s85
    %p92 = scmp.eq.s32.totalorder %s14, 1
    %p93 = por %p91, %p92
    %p94 = scmp.ne.s32.totalorder %s85, %s86
    %p95 = scmp.eq.s32.totalorder %s14, 0
    %p96 = por %p94, %p95
    %p97 = scmp.ne.s32.totalorder %s85, %s86
    %p98 = scmp.eq.s32.totalorder %s15, 1
    %p99 = por %p97, %p98
    %p101 = scmp.ne.s32.totalorder %s86, %s100
    %p102 = scmp.eq.s32.totalorder %s15, 0
    %p103 = por %p101, %p102
    %s104 = ssub.s32 %s16, %s28
    %p105 = scmp.eq.s32.totalorder %s104, 0
    %s107 = sadd.s32 %s106, 1
    %s108 = scalar_select %p105, %s106, %s107
    %p111 = pneg %p105
    %p112 = scmp.eq.s32.totalorder %s9, 1
    %p113 = por %p111, %p112
    %p114 = scmp.ne.s32.totalorder %s106, %s109
    %p115 = scmp.eq.s32.totalorder %s9, 0
    %p116 = por %p114, %p115
    %p117 = scmp.ne.s32.totalorder %s106, %s109
    %p118 = scmp.eq.s32.totalorder %s14, 1
    %p119 = por %p117, %p118
    %p120 = scmp.ne.s32.totalorder %s109, %s110
    %p121 = scmp.eq.s32.totalorder %s14, 0
    %p122 = por %p120, %p121
    %p123 = scmp.ne.s32.totalorder %s109, %s110
    %p124 = scmp.eq.s32.totalorder %s15, 1
    %p125 = por %p123, %p124
    %p127 = scmp.ne.s32.totalorder %s110, %s126
    %p128 = scmp.eq.s32.totalorder %s15, 0
    %p129 = por %p127, %p128
    %p130 = scmp.le.s32.totalorder 1, %s9
    %p131 = scmp.lt.s32.totalorder %s9, 3
    %p132 = pnand %p130, %p131
    %p133 = pneg %p132
    // Predicated region
    $region9: #{linear_classifier_forward.1} parent=5 // pred_check
      _
    $region10: #{linear_classifier_forward.1} parent=5 // pred_check_branch
      %135 = sbr.rel (%p132) target = $region12
    $region11: #{linear_classifier_forward.1} parent=5 // pred_region
      %s136 = ssub.s32 %s9, 1
      // Predicated region
      $region13: #{linear_classifier_forward.1} parent=11 // pred_check
        %p137 = pneg %p75
      $region14: #{linear_classifier_forward.1} parent=11 // pred_check_branch
        %139 = sbr.rel (%p137) target = $region16
      $region15: #{linear_classifier_forward.1} parent=11 // pred_region
        %s140 = smul.u32 98, %s19
        %p141 = scmp.lt.s32.totalorder %s140, 97
        %s142 = scalar_select %p141, %s140, 97
        %s143 = smul.addr %s142, 8
        %s144 = scalar_lea.vmem %s1, %s143
        %s145 = smul.u32 98, %s19
      $region16: #{linear_classifier_forward.1} parent=11 // pred_fallthru
        _
      // Predicated region
      $region17: #{linear_classifier_forward.1} parent=11 // pred_check
        %p146 = pneg %p96
      $region18: #{linear_classifier_forward.1} parent=11 // pred_check_branch
        %148 = sbr.rel (%p146) target = $region20
      $region19: #{linear_classifier_forward.1} parent=11 // pred_region
        _
      $region20: #{linear_classifier_forward.1} parent=11 // pred_fallthru
        _
    $region12: #{linear_classifier_forward.1} parent=5 // pred_fallthru
      _
    %p149 = scmp.lt.s32.totalorder %s9, 2
    // Predicated region
    $region21: #{linear_classifier_forward.1} parent=5 // pred_check
      %p150 = pneg %p149
    $region22: #{linear_classifier_forward.1} parent=5 // pred_check_branch
      %152 = sbr.rel (%p150) target = $region24
    $region23: #{linear_classifier_forward.1} parent=5 // pred_region
      // Predicated region
      $region25: #{linear_classifier_forward.1} parent=23 // pred_check
        %p153 = pneg %p43
      $region26: #{linear_classifier_forward.1} parent=23 // pred_check_branch
        %155 = sbr.rel (%p153) target = $region28
      $region27: #{linear_classifier_forward.1} parent=23 // pred_region
        %s156 = smul.u32 32, %s16
        %s157 = smul.u32 7, %s17
        %p158 = scmp.lt.s32.totalorder %s156, 63
        %s159 = scalar_select %p158, %s156, 63
        %p160 = scmp.lt.s32.totalorder %s157, 6
        %s161 = scalar_select %p160, %s157, 6
        %s162 = smul.addr %s159, 7
        %s163 = sadd.s32 %s161, %s162
        %s164 = smul.addr %s163, 8
        %s165 = scalar_lea.vmem %s0, %s164
        %s166 = smul.u32 32, %s16
        %s167 = smul.u32 7, %s17
      $region28: #{linear_classifier_forward.1} parent=23 // pred_fallthru
        _
    $region24: #{linear_classifier_forward.1} parent=5 // pred_fallthru
      _
    %p168 = scmp.le.s32.totalorder 1, %s9
    %p169 = scmp.lt.s32.totalorder %s9, 3
    %p170 = pnand %p168, %p169
    %p171 = pneg %p170
    // Predicated region
    $region29: #{linear_classifier_forward.1} parent=5 // pred_check
      _
    $region30: #{linear_classifier_forward.1} parent=5 // pred_check_branch
      %173 = sbr.rel (%p170) target = $region32
    $region31: #{linear_classifier_forward.1} parent=5 // pred_region
      %s174 = ssub.s32 %s9, 1
      %s175 = smul.u32 32, %s18
      %s176 = smul.u32 7, %s19
      %p177 = scmp.lt.s32.totalorder %s175, 63
      %s178 = scalar_select %p177, %s175, 63
      %p179 = scmp.lt.s32.totalorder %s176, 6
      %s180 = scalar_select %p179, %s176, 6
      %s181 = smul.addr %s178, 7
      %s182 = sadd.s32 %s180, %s181
      %s183 = smul.addr %s182, 8
      %s184 = scalar_lea.vmem %s0, %s183
      %p185 = pneg %p49
      %p186 = pneg %p46
      %s187 = smul.u32 98, %s19
      %p188 = scmp.lt.s32.totalorder %s187, 97
      %s189 = scalar_select %p188, %s187, 97
      %s190 = smul.addr %s189, 8
      %s191 = scalar_lea.vmem %s1, %s190
      %p192 = pneg %p75
      %p193 = pneg %p72
      %p194 = pneg %p96
      %p195 = pneg %p93
      %p196 = pneg %p122
      %p197 = pneg %p119
      %s198 = smul.u32 32, %s18
      %p199 = scmp.lt.s32.totalorder %s198, 63
      %s200 = scalar_select %p199, %s198, 63
      %s201 = smul.addr %s200, 8
      %s202 = scalar_lea.vmem %s3, %s201
      %s203 = smul.u32 32, %s18
      %s204 = smul.u32 7, %s19
      %p205 = scmp.lt.s32.totalorder %s203, 63
      %s206 = scalar_select %p205, %s203, 63
      %p207 = scmp.lt.s32.totalorder %s204, 6
      %s208 = scalar_select %p207, %s204, 6
      %s209 = smul.addr %s206, 7
      %s210 = sadd.s32 %s208, %s209
      %s211 = smul.addr %s210, 8
      %s212 = scalar_lea.vmem %s0, %s211
      %s213 = smul.u32 32, %s18
      %s214 = smul.u32 7, %s19
      %s215 = smul.u32 98, %s19
      %p216 = scmp.lt.s32.totalorder %s215, 97
      %s217 = scalar_select %p216, %s215, 97
      %s218 = smul.addr %s217, 8
      %s219 = scalar_lea.vmem %s1, %s218
      %s220 = smul.u32 98, %s19
      %s221 = smul.u32 32, %s18
      %p222 = scmp.lt.s32.totalorder %s221, 63
      %s223 = scalar_select %p222, %s221, 63
      %s224 = smul.addr %s223, 8
      %s225 = scalar_lea.vmem %s3, %s224
      %s226 = smul.u32 32, %s18
      %p227 = scmp.eq.s32.totalorder %s19, 0
      // Predicated region
      $region33: #{linear_classifier_forward.1} parent=31 // pred_check
        %p228 = pneg %p227
      $region34: #{linear_classifier_forward.1} parent=31 // pred_check_branch
        %230 = sbr.rel (%p228) target = $region36
      $region35: #{linear_classifier_forward.1} parent=31 // pred_region
        %231 = vst [vmem:[#allocation2] sm:$0xff] 0.0
        %232 = vst [vmem:[#allocation2 + $0x8] sm:$0xff] 0.0
        %233 = vst [vmem:[#allocation2 + $0x10] sm:$0xff] 0.0
        %234 = vst [vmem:[#allocation2 + $0x18] sm:$0xff] 0.0
        %235 = vst [vmem:[#allocation2 + $0x20] sm:$0xff] 0.0
        %236 = vst [vmem:[#allocation2 + $0x28] sm:$0xff] 0.0
        %237 = vst [vmem:[#allocation2 + $0x30] sm:$0xff] 0.0
        %238 = vst [vmem:[#allocation2 + $0x38] sm:$0xff] 0.0
        %239 = vst [vmem:[#allocation2 + $0x40] sm:$0xff] 0.0
        %240 = vst [vmem:[#allocation2 + $0x48] sm:$0xff] 0.0
        %241 = vst [vmem:[#allocation2 + $0x50] sm:$0xff] 0.0
        %242 = vst [vmem:[#allocation2 + $0x58] sm:$0xff] 0.0
        %243 = vst [vmem:[#allocation2 + $0x60] sm:$0xff] 0.0
        %244 = vst [vmem:[#allocation2 + $0x68] sm:$0xff] 0.0
        %245 = vst [vmem:[#allocation2 + $0x70] sm:$0xff] 0.0
        %246 = vst [vmem:[#allocation2 + $0x78] sm:$0xff] 0.0
        %247 = vst [vmem:[#allocation2 + $0x80] sm:$0xff] 0.0
        %248 = vst [vmem:[#allocation2 + $0x88] sm:$0xff] 0.0
        %249 = vst [vmem:[#allocation2 + $0x90] sm:$0xff] 0.0
        %250 = vst [vmem:[#allocation2 + $0x98] sm:$0xff] 0.0
        %251 = vst [vmem:[#allocation2 + $0xa0] sm:$0xff] 0.0
        %252 = vst [vmem:[#allocation2 + $0xa8] sm:$0xff] 0.0
        %253 = vst [vmem:[#allocation2 + $0xb0] sm:$0xff] 0.0
        %254 = vst [vmem:[#allocation2 + $0xb8] sm:$0xff] 0.0
        %255 = vst [vmem:[#allocation2 + $0xc0] sm:$0xff] 0.0
        %256 = vst [vmem:[#allocation2 + $0xc8] sm:$0xff] 0.0
        %257 = vst [vmem:[#allocation2 + $0xd0] sm:$0xff] 0.0
        %258 = vst [vmem:[#allocation2 + $0xd8] sm:$0xff] 0.0
        %259 = vst [vmem:[#allocation2 + $0xe0] sm:$0xff] 0.0
        %260 = vst [vmem:[#allocation2 + $0xe8] sm:$0xff] 0.0
        %261 = vst [vmem:[#allocation2 + $0xf0] sm:$0xff] 0.0
        %262 = vst [vmem:[#allocation2 + $0xf8] sm:$0xff] 0.0
      $region36: #{linear_classifier_forward.1} parent=31 // pred_fallthru
        _
      %v263 = vld [vmem:[#allocation2] sm:$0xff]
      %v264 = vld [vmem:[#allocation2 + $0x8] sm:$0xff]
      %v265 = vld [vmem:[#allocation2 + $0x10] sm:$0xff]
      %v266 = vld [vmem:[#allocation2 + $0x18] sm:$0xff]
      %v267 = vld [vmem:[#allocation2 + $0x20] sm:$0xff]
      %v268 = vld [vmem:[#allocation2 + $0x28] sm:$0xff]
      %v269 = vld [vmem:[#allocation2 + $0x30] sm:$0xff]
      %v270 = vld [vmem:[#allocation2 + $0x38] sm:$0xff]
      %v271 = vld [vmem:[#allocation2 + $0x40] sm:$0xff]
      %v272 = vld [vmem:[#allocation2 + $0x48] sm:$0xff]
      %v273 = vld [vmem:[#allocation2 + $0x50] sm:$0xff]
      %v274 = vld [vmem:[#allocation2 + $0x58] sm:$0xff]
      %v275 = vld [vmem:[#allocation2 + $0x60] sm:$0xff]
      %v276 = vld [vmem:[#allocation2 + $0x68] sm:$0xff]
      %v277 = vld [vmem:[#allocation2 + $0x70] sm:$0xff]
      %v278 = vld [vmem:[#allocation2 + $0x78] sm:$0xff]
      %v279 = vld [vmem:[#allocation2 + $0x80] sm:$0xff]
      %v280 = vld [vmem:[#allocation2 + $0x88] sm:$0xff]
      %v281 = vld [vmem:[#allocation2 + $0x90] sm:$0xff]
      %v282 = vld [vmem:[#allocation2 + $0x98] sm:$0xff]
      %v283 = vld [vmem:[#allocation2 + $0xa0] sm:$0xff]
      %v284 = vld [vmem:[#allocation2 + $0xa8] sm:$0xff]
      %v285 = vld [vmem:[#allocation2 + $0xb0] sm:$0xff]
      %v286 = vld [vmem:[#allocation2 + $0xb8] sm:$0xff]
      %v287 = vld [vmem:[#allocation2 + $0xc0] sm:$0xff]
      %v288 = vld [vmem:[#allocation2 + $0xc8] sm:$0xff]
      %v289 = vld [vmem:[#allocation2 + $0xd0] sm:$0xff]
      %v290 = vld [vmem:[#allocation2 + $0xd8] sm:$0xff]
      %v291 = vld [vmem:[#allocation2 + $0xe0] sm:$0xff]
      %v292 = vld [vmem:[#allocation2 + $0xe8] sm:$0xff]
      %v293 = vld [vmem:[#allocation2 + $0xf0] sm:$0xff]
      %v294 = vld [vmem:[#allocation2 + $0xf8] sm:$0xff]
      %v295 = vld [vmem:[%s212] sm:$0xff]
      %v296 = vld [vmem:[%s212 + $0x8] sm:$0xff]
      %v297 = vld [vmem:[%s212 + $0x10] sm:$0xff]
      %v298 = vld [vmem:[%s212 + $0x18] sm:$0xff]
      %v299 = vld [vmem:[%s212 + $0x20] sm:$0xff]
      %v300 = vld [vmem:[%s212 + $0x28] sm:$0xff]
      %v301 = vld [vmem:[%s212 + $0x30] sm:$0xff]
      %v302 = vld [vmem:[%s212 + $0x38] sm:$0xff]
      %v303 = vld [vmem:[%s212 + $0x40] sm:$0xff]
      %v304 = vld [vmem:[%s212 + $0x48] sm:$0xff]
      %v305 = vld [vmem:[%s212 + $0x50] sm:$0xff]
      %v306 = vld [vmem:[%s212 + $0x58] sm:$0xff]
      %v307 = vld [vmem:[%s212 + $0x60] sm:$0xff]
      %v308 = vld [vmem:[%s212 + $0x68] sm:$0xff]
      %v309 = vld [vmem:[%s212 + $0x70] sm:$0xff]
      %v310 = vld [vmem:[%s212 + $0x78] sm:$0xff]
      %v311 = vld [vmem:[%s212 + $0x80] sm:$0xff]
      %v312 = vld [vmem:[%s212 + $0x88] sm:$0xff]
      %v313 = vld [vmem:[%s212 + $0x90] sm:$0xff]
      %v314 = vld [vmem:[%s212 + $0x98] sm:$0xff]
      %v315 = vld [vmem:[%s212 + $0xa0] sm:$0xff]
      %v316 = vld [vmem:[%s212 + $0xa8] sm:$0xff]
      %v317 = vld [vmem:[%s212 + $0xb0] sm:$0xff]
      %v318 = vld [vmem:[%s212 + $0xb8] sm:$0xff]
      %v319 = vld [vmem:[%s212 + $0xc0] sm:$0xff]
      %v320 = vld [vmem:[%s212 + $0xc8] sm:$0xff]
      %v321 = vld [vmem:[%s212 + $0xd0] sm:$0xff]
      %v322 = vld [vmem:[%s212 + $0xd8] sm:$0xff]
      %v323 = vld [vmem:[%s212 + $0xe0] sm:$0xff]
      %v324 = vld [vmem:[%s212 + $0xe8] sm:$0xff]
      %v325 = vld [vmem:[%s212 + $0xf0] sm:$0xff]
      %v326 = vld [vmem:[%s212 + $0xf8] sm:$0xff]
      %v327 = vld [vmem:[%s212 + $0x100] sm:$0xff]
      %v328 = vld [vmem:[%s212 + $0x108] sm:$0xff]
      %v329 = vld [vmem:[%s212 + $0x110] sm:$0xff]
      %v330 = vld [vmem:[%s212 + $0x118] sm:$0xff]
      %v331 = vld [vmem:[%s212 + $0x120] sm:$0xff]
      %v332 = vld [vmem:[%s212 + $0x128] sm:$0xff]
      %v333 = vld [vmem:[%s212 + $0x130] sm:$0xff]
      %v334 = vld [vmem:[%s212 + $0x138] sm:$0xff]
      %v335 = vld [vmem:[%s212 + $0x140] sm:$0xff]
      %v336 = vld [vmem:[%s212 + $0x148] sm:$0xff]
      %v337 = vld [vmem:[%s212 + $0x150] sm:$0xff]
      %v338 = vld [vmem:[%s212 + $0x158] sm:$0xff]
      %v339 = vld [vmem:[%s212 + $0x160] sm:$0xff]
      %v340 = vld [vmem:[%s212 + $0x168] sm:$0xff]
      %v341 = vld [vmem:[%s212 + $0x170] sm:$0xff]
      %v342 = vld [vmem:[%s212 + $0x178] sm:$0xff]
      %v343 = vld [vmem:[%s212 + $0x180] sm:$0xff]
      %v344 = vld [vmem:[%s212 + $0x188] sm:$0xff]
      %v345 = vld [vmem:[%s212 + $0x190] sm:$0xff]
      %v346 = vld [vmem:[%s212 + $0x198] sm:$0xff]
      %v347 = vld [vmem:[%s212 + $0x1a0] sm:$0xff]
      %v348 = vld [vmem:[%s212 + $0x1a8] sm:$0xff]
      %v349 = vld [vmem:[%s212 + $0x1b0] sm:$0xff]
      %v350 = vld [vmem:[%s212 + $0x1b8] sm:$0xff]
      %v351 = vld [vmem:[%s212 + $0x1c0] sm:$0xff]
      %v352 = vld [vmem:[%s212 + $0x1c8] sm:$0xff]
      %v353 = vld [vmem:[%s212 + $0x1d0] sm:$0xff]
      %v354 = vld [vmem:[%s212 + $0x1d8] sm:$0xff]
      %v355 = vld [vmem:[%s212 + $0x1e0] sm:$0xff]
      %v356 = vld [vmem:[%s212 + $0x1e8] sm:$0xff]
      %v357 = vld [vmem:[%s212 + $0x1f0] sm:$0xff]
      %v358 = vld [vmem:[%s212 + $0x1f8] sm:$0xff]
      %v359 = vld [vmem:[%s212 + $0x200] sm:$0xff]
      %v360 = vld [vmem:[%s212 + $0x208] sm:$0xff]
      %v361 = vld [vmem:[%s212 + $0x210] sm:$0xff]
      %v362 = vld [vmem:[%s212 + $0x218] sm:$0xff]
      %v363 = vld [vmem:[%s212 + $0x220] sm:$0xff]
      %v364 = vld [vmem:[%s212 + $0x228] sm:$0xff]
      %v365 = vld [vmem:[%s212 + $0x230] sm:$0xff]
      %v366 = vld [vmem:[%s212 + $0x238] sm:$0xff]
      %v367 = vld [vmem:[%s212 + $0x240] sm:$0xff]
      %v368 = vld [vmem:[%s212 + $0x248] sm:$0xff]
      %v369 = vld [vmem:[%s212 + $0x250] sm:$0xff]
      %v370 = vld [vmem:[%s212 + $0x258] sm:$0xff]
      %v371 = vld [vmem:[%s212 + $0x260] sm:$0xff]
      %v372 = vld [vmem:[%s212 + $0x268] sm:$0xff]
      %v373 = vld [vmem:[%s212 + $0x270] sm:$0xff]
      %v374 = vld [vmem:[%s212 + $0x278] sm:$0xff]
      %v375 = vld [vmem:[%s212 + $0x280] sm:$0xff]
      %v376 = vld [vmem:[%s212 + $0x288] sm:$0xff]
      %v377 = vld [vmem:[%s212 + $0x290] sm:$0xff]
      %v378 = vld [vmem:[%s212 + $0x298] sm:$0xff]
      %v379 = vld [vmem:[%s212 + $0x2a0] sm:$0xff]
      %v380 = vld [vmem:[%s212 + $0x2a8] sm:$0xff]
      %v381 = vld [vmem:[%s212 + $0x2b0] sm:$0xff]
      %v382 = vld [vmem:[%s212 + $0x2b8] sm:$0xff]
      %v383 = vld [vmem:[%s212 + $0x2c0] sm:$0xff]
      %v384 = vld [vmem:[%s212 + $0x2c8] sm:$0xff]
      %v385 = vld [vmem:[%s212 + $0x2d0] sm:$0xff]
      %v386 = vld [vmem:[%s212 + $0x2d8] sm:$0xff]
      %v387 = vld [vmem:[%s212 + $0x2e0] sm:$0xff]
      %v388 = vld [vmem:[%s212 + $0x2e8] sm:$0xff]
      %v389 = vld [vmem:[%s212 + $0x2f0] sm:$0xff]
      %v390 = vld [vmem:[%s212 + $0x2f8] sm:$0xff]
      %v391 = vld [vmem:[%s212 + $0x300] sm:$0xff]
      %v392 = vld [vmem:[%s212 + $0x308] sm:$0xff]
      %v393 = vld [vmem:[%s212 + $0x310] sm:$0xff]
      %v394 = vld [vmem:[%s212 + $0x318] sm:$0xff]
      %v395 = vld [vmem:[%s212 + $0x320] sm:$0xff]
      %v396 = vld [vmem:[%s212 + $0x328] sm:$0xff]
      %v397 = vld [vmem:[%s212 + $0x330] sm:$0xff]
      %v398 = vld [vmem:[%s212 + $0x338] sm:$0xff]
      %v399 = vld [vmem:[%s212 + $0x340] sm:$0xff]
      %v400 = vld [vmem:[%s212 + $0x348] sm:$0xff]
      %v401 = vld [vmem:[%s212 + $0x350] sm:$0xff]
      %v402 = vld [vmem:[%s212 + $0x358] sm:$0xff]
      %v403 = vld [vmem:[%s212 + $0x360] sm:$0xff]
      %v404 = vld [vmem:[%s212 + $0x368] sm:$0xff]
      %v405 = vld [vmem:[%s212 + $0x370] sm:$0xff]
      %v406 = vld [vmem:[%s212 + $0x378] sm:$0xff]
      %v407 = vld [vmem:[%s212 + $0x380] sm:$0xff]
      %v408 = vld [vmem:[%s212 + $0x388] sm:$0xff]
      %v409 = vld [vmem:[%s212 + $0x390] sm:$0xff]
      %v410 = vld [vmem:[%s212 + $0x398] sm:$0xff]
      %v411 = vld [vmem:[%s212 + $0x3a0] sm:$0xff]
      %v412 = vld [vmem:[%s212 + $0x3a8] sm:$0xff]
      %v413 = vld [vmem:[%s212 + $0x3b0] sm:$0xff]
      %v414 = vld [vmem:[%s212 + $0x3b8] sm:$0xff]
      %v415 = vld [vmem:[%s212 + $0x3c0] sm:$0xff]
      %v416 = vld [vmem:[%s212 + $0x3c8] sm:$0xff]
      %v417 = vld [vmem:[%s212 + $0x3d0] sm:$0xff]
      %v418 = vld [vmem:[%s212 + $0x3d8] sm:$0xff]
      %v419 = vld [vmem:[%s212 + $0x3e0] sm:$0xff]
      %v420 = vld [vmem:[%s212 + $0x3e8] sm:$0xff]
      %v421 = vld [vmem:[%s212 + $0x3f0] sm:$0xff]
      %v422 = vld [vmem:[%s212 + $0x3f8] sm:$0xff]
      %v423 = vld [vmem:[%s212 + $0x400] sm:$0xff]
      %v424 = vld [vmem:[%s212 + $0x408] sm:$0xff]
      %v425 = vld [vmem:[%s212 + $0x410] sm:$0xff]
      %v426 = vld [vmem:[%s212 + $0x418] sm:$0xff]
      %v427 = vld [vmem:[%s212 + $0x420] sm:$0xff]
      %v428 = vld [vmem:[%s212 + $0x428] sm:$0xff]
      %v429 = vld [vmem:[%s212 + $0x430] sm:$0xff]
      %v430 = vld [vmem:[%s212 + $0x438] sm:$0xff]
      %v431 = vld [vmem:[%s212 + $0x440] sm:$0xff]
      %v432 = vld [vmem:[%s212 + $0x448] sm:$0xff]
      %v433 = vld [vmem:[%s212 + $0x450] sm:$0xff]
      %v434 = vld [vmem:[%s212 + $0x458] sm:$0xff]
      %v435 = vld [vmem:[%s212 + $0x460] sm:$0xff]
      %v436 = vld [vmem:[%s212 + $0x468] sm:$0xff]
      %v437 = vld [vmem:[%s212 + $0x470] sm:$0xff]
      %v438 = vld [vmem:[%s212 + $0x478] sm:$0xff]
      %v439 = vld [vmem:[%s212 + $0x480] sm:$0xff]
      %v440 = vld [vmem:[%s212 + $0x488] sm:$0xff]
      %v441 = vld [vmem:[%s212 + $0x490] sm:$0xff]
      %v442 = vld [vmem:[%s212 + $0x498] sm:$0xff]
      %v443 = vld [vmem:[%s212 + $0x4a0] sm:$0xff]
      %v444 = vld [vmem:[%s212 + $0x4a8] sm:$0xff]
      %v445 = vld [vmem:[%s212 + $0x4b0] sm:$0xff]
      %v446 = vld [vmem:[%s212 + $0x4b8] sm:$0xff]
      %v447 = vld [vmem:[%s212 + $0x4c0] sm:$0xff]
      %v448 = vld [vmem:[%s212 + $0x4c8] sm:$0xff]
      %v449 = vld [vmem:[%s212 + $0x4d0] sm:$0xff]
      %v450 = vld [vmem:[%s212 + $0x4d8] sm:$0xff]
      %v451 = vld [vmem:[%s212 + $0x4e0] sm:$0xff]
      %v452 = vld [vmem:[%s212 + $0x4e8] sm:$0xff]
      %v453 = vld [vmem:[%s212 + $0x4f0] sm:$0xff]
      %v454 = vld [vmem:[%s212 + $0x4f8] sm:$0xff]
      %v455 = vld [vmem:[%s212 + $0x500] sm:$0xff]
      %v456 = vld [vmem:[%s212 + $0x508] sm:$0xff]
      %v457 = vld [vmem:[%s212 + $0x510] sm:$0xff]
      %v458 = vld [vmem:[%s212 + $0x518] sm:$0xff]
      %v459 = vld [vmem:[%s212 + $0x520] sm:$0xff]
      %v460 = vld [vmem:[%s212 + $0x528] sm:$0xff]
      %v461 = vld [vmem:[%s212 + $0x530] sm:$0xff]
      %v462 = vld [vmem:[%s212 + $0x538] sm:$0xff]
      %v463 = vld [vmem:[%s212 + $0x540] sm:$0xff]
      %v464 = vld [vmem:[%s212 + $0x548] sm:$0xff]
      %v465 = vld [vmem:[%s212 + $0x550] sm:$0xff]
      %v466 = vld [vmem:[%s212 + $0x558] sm:$0xff]
      %v467 = vld [vmem:[%s212 + $0x560] sm:$0xff]
      %v468 = vld [vmem:[%s212 + $0x568] sm:$0xff]
      %v469 = vld [vmem:[%s212 + $0x570] sm:$0xff]
      %v470 = vld [vmem:[%s212 + $0x578] sm:$0xff]
      %v471 = vld [vmem:[%s212 + $0x580] sm:$0xff]
      %v472 = vld [vmem:[%s212 + $0x588] sm:$0xff]
      %v473 = vld [vmem:[%s212 + $0x590] sm:$0xff]
      %v474 = vld [vmem:[%s212 + $0x598] sm:$0xff]
      %v475 = vld [vmem:[%s212 + $0x5a0] sm:$0xff]
      %v476 = vld [vmem:[%s212 + $0x5a8] sm:$0xff]
      %v477 = vld [vmem:[%s212 + $0x5b0] sm:$0xff]
      %v478 = vld [vmem:[%s212 + $0x5b8] sm:$0xff]
      %v479 = vld [vmem:[%s212 + $0x5c0] sm:$0xff]
      %v480 = vld [vmem:[%s212 + $0x5c8] sm:$0xff]
      %v481 = vld [vmem:[%s212 + $0x5d0] sm:$0xff]
      %v482 = vld [vmem:[%s212 + $0x5d8] sm:$0xff]
      %v483 = vld [vmem:[%s212 + $0x5e0] sm:$0xff]
      %v484 = vld [vmem:[%s212 + $0x5e8] sm:$0xff]
      %v485 = vld [vmem:[%s212 + $0x5f0] sm:$0xff]
      %v486 = vld [vmem:[%s212 + $0x5f8] sm:$0xff]
      %v487 = vld [vmem:[%s212 + $0x600] sm:$0xff]
      %v488 = vld [vmem:[%s212 + $0x608] sm:$0xff]
      %v489 = vld [vmem:[%s212 + $0x610] sm:$0xff]
      %v490 = vld [vmem:[%s212 + $0x618] sm:$0xff]
      %v491 = vld [vmem:[%s212 + $0x620] sm:$0xff]
      %v492 = vld [vmem:[%s212 + $0x628] sm:$0xff]
      %v493 = vld [vmem:[%s212 + $0x630] sm:$0xff]
      %v494 = vld [vmem:[%s212 + $0x638] sm:$0xff]
      %v495 = vld [vmem:[%s212 + $0x640] sm:$0xff]
      %v496 = vld [vmem:[%s212 + $0x648] sm:$0xff]
      %v497 = vld [vmem:[%s212 + $0x650] sm:$0xff]
      %v498 = vld [vmem:[%s212 + $0x658] sm:$0xff]
      %v499 = vld [vmem:[%s212 + $0x660] sm:$0xff]
      %v500 = vld [vmem:[%s212 + $0x668] sm:$0xff]
      %v501 = vld [vmem:[%s212 + $0x670] sm:$0xff]
      %v502 = vld [vmem:[%s212 + $0x678] sm:$0xff]
      %v503 = vld [vmem:[%s212 + $0x680] sm:$0xff]
      %v504 = vld [vmem:[%s212 + $0x688] sm:$0xff]
      %v505 = vld [vmem:[%s212 + $0x690] sm:$0xff]
      %v506 = vld [vmem:[%s212 + $0x698] sm:$0xff]
      %v507 = vld [vmem:[%s212 + $0x6a0] sm:$0xff]
      %v508 = vld [vmem:[%s212 + $0x6a8] sm:$0xff]
      %v509 = vld [vmem:[%s212 + $0x6b0] sm:$0xff]
      %v510 = vld [vmem:[%s212 + $0x6b8] sm:$0xff]
      %v511 = vld [vmem:[%s212 + $0x6c0] sm:$0xff]
      %v512 = vld [vmem:[%s212 + $0x6c8] sm:$0xff]
      %v513 = vld [vmem:[%s212 + $0x6d0] sm:$0xff]
      %v514 = vld [vmem:[%s212 + $0x6d8] sm:$0xff]
      %v515 = vld [vmem:[%s212 + $0x6e0] sm:$0xff]
      %v516 = vld [vmem:[%s212 + $0x6e8] sm:$0xff]
      %v517 = vld [vmem:[%s212 + $0x6f0] sm:$0xff]
      %v518 = vld [vmem:[%s212 + $0x6f8] sm:$0xff]
      %v519 = vld [vmem:[%s219] sm:$0xff]
      %v520 = vld [vmem:[%s219 + $0x8] sm:$0xff]
      %v521 = vld [vmem:[%s219 + $0x10] sm:$0xff]
      %v522 = vld [vmem:[%s219 + $0x18] sm:$0xff]
      %v523 = vld [vmem:[%s219 + $0x20] sm:$0xff]
      %v524 = vld [vmem:[%s219 + $0x28] sm:$0xff]
      %v525 = vld [vmem:[%s219 + $0x30] sm:$0xff]
      %v526 = vld [vmem:[%s219 + $0x38] sm:$0xff]
      %v527 = vld [vmem:[%s219 + $0x40] sm:$0xff]
      %v528 = vld [vmem:[%s219 + $0x48] sm:$0xff]
      %v529 = vld [vmem:[%s219 + $0x50] sm:$0xff]
      %v530 = vld [vmem:[%s219 + $0x58] sm:$0xff]
      %v531 = vld [vmem:[%s219 + $0x60] sm:$0xff]
      %v532 = vld [vmem:[%s219 + $0x68] sm:$0xff]
      %v533 = vld [vmem:[%s219 + $0x70] sm:$0xff]
      %v534 = vld [vmem:[%s219 + $0x78] sm:$0xff]
      %v535 = vld [vmem:[%s219 + $0x80] sm:$0xff]
      %v536 = vld [vmem:[%s219 + $0x88] sm:$0xff]
      %v537 = vld [vmem:[%s219 + $0x90] sm:$0xff]
      %v538 = vld [vmem:[%s219 + $0x98] sm:$0xff]
      %v539 = vld [vmem:[%s219 + $0xa0] sm:$0xff]
      %v540 = vld [vmem:[%s219 + $0xa8] sm:$0xff]
      %v541 = vld [vmem:[%s219 + $0xb0] sm:$0xff]
      %v542 = vld [vmem:[%s219 + $0xb8] sm:$0xff]
      %v543 = vld [vmem:[%s219 + $0xc0] sm:$0xff]
      %v544 = vld [vmem:[%s219 + $0xc8] sm:$0xff]
      %v545 = vld [vmem:[%s219 + $0xd0] sm:$0xff]
      %v546 = vld [vmem:[%s219 + $0xd8] sm:$0xff]
      %v547 = vld [vmem:[%s219 + $0xe0] sm:$0xff]
      %v548 = vld [vmem:[%s219 + $0xe8] sm:$0xff]
      %v549 = vld [vmem:[%s219 + $0xf0] sm:$0xff]
      %v550 = vld [vmem:[%s219 + $0xf8] sm:$0xff]
      %v551 = vld [vmem:[%s219 + $0x100] sm:$0xff]
      %v552 = vld [vmem:[%s219 + $0x108] sm:$0xff]
      %v553 = vld [vmem:[%s219 + $0x110] sm:$0xff]
      %v554 = vld [vmem:[%s219 + $0x118] sm:$0xff]
      %v555 = vld [vmem:[%s219 + $0x120] sm:$0xff]
      %v556 = vld [vmem:[%s219 + $0x128] sm:$0xff]
      %v557 = vld [vmem:[%s219 + $0x130] sm:$0xff]
      %v558 = vld [vmem:[%s219 + $0x138] sm:$0xff]
      %v559 = vld [vmem:[%s219 + $0x140] sm:$0xff]
      %v560 = vld [vmem:[%s219 + $0x148] sm:$0xff]
      %v561 = vld [vmem:[%s219 + $0x150] sm:$0xff]
      %v562 = vld [vmem:[%s219 + $0x158] sm:$0xff]
      %v563 = vld [vmem:[%s219 + $0x160] sm:$0xff]
      %v564 = vld [vmem:[%s219 + $0x168] sm:$0xff]
      %v565 = vld [vmem:[%s219 + $0x170] sm:$0xff]
      %v566 = vld [vmem:[%s219 + $0x178] sm:$0xff]
      %v567 = vld [vmem:[%s219 + $0x180] sm:$0xff]
      %v568 = vld [vmem:[%s219 + $0x188] sm:$0xff]
      %v569 = vld [vmem:[%s219 + $0x190] sm:$0xff]
      %v570 = vld [vmem:[%s219 + $0x198] sm:$0xff]
      %v571 = vld [vmem:[%s219 + $0x1a0] sm:$0xff]
      %v572 = vld [vmem:[%s219 + $0x1a8] sm:$0xff]
      %v573 = vld [vmem:[%s219 + $0x1b0] sm:$0xff]
      %v574 = vld [vmem:[%s219 + $0x1b8] sm:$0xff]
      %v575 = vld [vmem:[%s219 + $0x1c0] sm:$0xff]
      %v576 = vld [vmem:[%s219 + $0x1c8] sm:$0xff]
      %v577 = vld [vmem:[%s219 + $0x1d0] sm:$0xff]
      %v578 = vld [vmem:[%s219 + $0x1d8] sm:$0xff]
      %v579 = vld [vmem:[%s219 + $0x1e0] sm:$0xff]
      %v580 = vld [vmem:[%s219 + $0x1e8] sm:$0xff]
      %v581 = vld [vmem:[%s219 + $0x1f0] sm:$0xff]
      %v582 = vld [vmem:[%s219 + $0x1f8] sm:$0xff]
      %v583 = vld [vmem:[%s219 + $0x200] sm:$0xff]
      %v584 = vld [vmem:[%s219 + $0x208] sm:$0xff]
      %v585 = vld [vmem:[%s219 + $0x210] sm:$0xff]
      %v586 = vld [vmem:[%s219 + $0x218] sm:$0xff]
      %v587 = vld [vmem:[%s219 + $0x220] sm:$0xff]
      %v588 = vld [vmem:[%s219 + $0x228] sm:$0xff]
      %v589 = vld [vmem:[%s219 + $0x230] sm:$0xff]
      %v590 = vld [vmem:[%s219 + $0x238] sm:$0xff]
      %v591 = vld [vmem:[%s219 + $0x240] sm:$0xff]
      %v592 = vld [vmem:[%s219 + $0x248] sm:$0xff]
      %v593 = vld [vmem:[%s219 + $0x250] sm:$0xff]
      %v594 = vld [vmem:[%s219 + $0x258] sm:$0xff]
      %v595 = vld [vmem:[%s219 + $0x260] sm:$0xff]
      %v596 = vld [vmem:[%s219 + $0x268] sm:$0xff]
      %v597 = vld [vmem:[%s219 + $0x270] sm:$0xff]
      %v598 = vld [vmem:[%s219 + $0x278] sm:$0xff]
      %v599 = vld [vmem:[%s219 + $0x280] sm:$0xff]
      %v600 = vld [vmem:[%s219 + $0x288] sm:$0xff]
      %v601 = vld [vmem:[%s219 + $0x290] sm:$0xff]
      %v602 = vld [vmem:[%s219 + $0x298] sm:$0xff]
      %v603 = vld [vmem:[%s219 + $0x2a0] sm:$0xff]
      %v604 = vld [vmem:[%s219 + $0x2a8] sm:$0xff]
      %v605 = vld [vmem:[%s219 + $0x2b0] sm:$0xff]
      %v606 = vld [vmem:[%s219 + $0x2b8] sm:$0xff]
      %v607 = vld [vmem:[%s219 + $0x2c0] sm:$0xff]
      %v608 = vld [vmem:[%s219 + $0x2c8] sm:$0xff]
      %v609 = vld [vmem:[%s219 + $0x2d0] sm:$0xff]
      %v610 = vld [vmem:[%s219 + $0x2d8] sm:$0xff]
      %v611 = vld [vmem:[%s219 + $0x2e0] sm:$0xff]
      %v612 = vld [vmem:[%s219 + $0x2e8] sm:$0xff]
      %v613 = vld [vmem:[%s219 + $0x2f0] sm:$0xff]
      %v614 = vld [vmem:[%s219 + $0x2f8] sm:$0xff]
      %v615 = vld [vmem:[%s219 + $0x300] sm:$0xff]
      %v616 = vld [vmem:[%s219 + $0x308] sm:$0xff]
      %vm617 = vcmask 130048
      %v619 = vsel %vm617, %v301, 0
      %v622 = vsel %vm617, %v308, 0
      %v625 = vsel %vm617, %v315, 0
      %v628 = vsel %vm617, %v322, 0
      %v631 = vsel %vm617, %v329, 0
      %v634 = vsel %vm617, %v336, 0
      %v637 = vsel %vm617, %v343, 0
      %v640 = vsel %vm617, %v350, 0
      %v643 = vsel %vm617, %v357, 0
      %v646 = vsel %vm617, %v364, 0
      %v649 = vsel %vm617, %v371, 0
      %v652 = vsel %vm617, %v378, 0
      %v655 = vsel %vm617, %v385, 0
      %v658 = vsel %vm617, %v392, 0
      %v661 = vsel %vm617, %v399, 0
      %v664 = vsel %vm617, %v406, 0
      %v667 = vsel %vm617, %v413, 0
      %v670 = vsel %vm617, %v420, 0
      %v673 = vsel %vm617, %v427, 0
      %v676 = vsel %vm617, %v434, 0
      %v679 = vsel %vm617, %v441, 0
      %v682 = vsel %vm617, %v448, 0
      %v685 = vsel %vm617, %v455, 0
      %v688 = vsel %vm617, %v462, 0
      %v691 = vsel %vm617, %v469, 0
      %v694 = vsel %vm617, %v476, 0
      %v697 = vsel %vm617, %v483, 0
      %v700 = vsel %vm617, %v490, 0
      %v703 = vsel %vm617, %v497, 0
      %v706 = vsel %vm617, %v504, 0
      %v709 = vsel %vm617, %v511, 0
      %v712 = vsel %vm617, %v518, 0
      %714 = vmatprep.subr.mxu0 0.0
      %715 = vmatpush1.msra.mxu0 %v534
      %716 = vmatprep.subr.mxu0 0.0
      %717 = vmatpush1.msra.mxu0 %v533
      %718 = vmatprep.subr.mxu0 0.0
      %719 = vmatpush1.msra.mxu0 %v532
      %720 = vmatprep.subr.mxu0 0.0
      %721 = vmatpush1.msra.mxu0 %v531
      %722 = vmatprep.subr.mxu0 0.0
      %723 = vmatpush1.msra.mxu0 %v530
      %724 = vmatprep.subr.mxu0 0.0
      %725 = vmatpush1.msra.mxu0 %v529
      %726 = vmatprep.subr.mxu0 0.0
      %727 = vmatpush1.msra.mxu0 %v528
      %728 = vmatprep.subr.mxu0 0.0
      %729 = vmatpush1.msra.mxu0 %v527
      %730 = vmatprep.subr.mxu0 0.0
      %731 = vmatpush1.msra.mxu0 %v526
      %732 = vmatprep.subr.mxu0 0.0
      %733 = vmatpush1.msra.mxu0 %v525
      %734 = vmatprep.subr.mxu0 0.0
      %735 = vmatpush1.msra.mxu0 %v524
      %736 = vmatprep.subr.mxu0 0.0
      %737 = vmatpush1.msra.mxu0 %v523
      %738 = vmatprep.subr.mxu0 0.0
      %739 = vmatpush1.msra.mxu0 %v522
      %740 = vmatprep.subr.mxu0 0.0
      %741 = vmatpush1.msra.mxu0 %v521
      %742 = vmatprep.subr.mxu0 0.0
      %743 = vmatpush1.msra.mxu0 %v520
      %744 = vmatprep.subr.mxu0 0.0
      %745 = vmatpush1.msra.mxu0 %v519
      %746 = vmatprep.subr.mxu0 0.0
      %747 = vmatpush2.msra.mxu0 %v550
      %748 = vmatprep.subr.mxu0 0.0
      %749 = vmatpush2.msra.mxu0 %v549
      %750 = vmatprep.subr.mxu0 0.0
      %751 = vmatpush2.msra.mxu0 %v548
      %752 = vmatprep.subr.mxu0 0.0
      %753 = vmatpush2.msra.mxu0 %v547
      %754 = vmatprep.subr.mxu0 0.0
      %755 = vmatpush2.msra.mxu0 %v546
      %756 = vmatprep.subr.mxu0 0.0
      %757 = vmatpush2.msra.mxu0 %v545
      %758 = vmatprep.subr.mxu0 0.0
      %759 = vmatpush2.msra.mxu0 %v544
      %760 = vmatprep.subr.mxu0 0.0
      %761 = vmatpush2.msra.mxu0 %v543
      %762 = vmatprep.subr.mxu0 0.0
      %763 = vmatpush2.msra.mxu0 %v542
      %764 = vmatprep.subr.mxu0 0.0
      %765 = vmatpush2.msra.mxu0 %v541
      %766 = vmatprep.subr.mxu0 0.0
      %767 = vmatpush2.msra.mxu0 %v540
      %768 = vmatprep.subr.mxu0 0.0
      %769 = vmatpush2.msra.mxu0 %v539
      %770 = vmatprep.subr.mxu0 0.0
      %771 = vmatpush2.msra.mxu0 %v538
      %772 = vmatprep.subr.mxu0 0.0
      %773 = vmatpush2.msra.mxu0 %v537
      %774 = vmatprep.subr.mxu0 0.0
      %775 = vmatpush2.msra.mxu0 %v536
      %776 = vmatprep.subr.mxu0 0.0
      %777 = vmatpush2.msra.mxu0 %v535
      %778 = vmatprep.mubr.f32.mxu0 %v296
      %779 = vmatmul.mubr.f32.gmra.mxu0 %v295
      %v780 = vpop.f32.mrf.mxu0
      %v781 = vadd.f32 0.0, %v780
      %v782 = vpop.f32.mrf.mxu0
      %783 = vmatprep.mubr.f32.mxu0 %v303
      %784 = vmatmul.mubr.f32.gmra.mxu0 %v302
      %v785 = vpop.f32.mrf.mxu0
      %v786 = vadd.f32 0.0, %v785
      %v787 = vpop.f32.mrf.mxu0
      %788 = vmatprep.mubr.f32.mxu0 %v310
      %789 = vmatmul.mubr.f32.gmra.mxu0 %v309
      %v790 = vpop.f32.mrf.mxu0
      %v791 = vadd.f32 0.0, %v790
      %v792 = vpop.f32.mrf.mxu0
      %793 = vmatprep.mubr.f32.mxu0 %v317
      %794 = vmatmul.mubr.f32.gmra.mxu0 %v316
      %v795 = vpop.f32.mrf.mxu0
      %v796 = vadd.f32 0.0, %v795
      %v797 = vpop.f32.mrf.mxu0
      %798 = vmatprep.mubr.f32.mxu0 %v324
      %799 = vmatmul.mubr.f32.gmra.mxu0 %v323
      %v800 = vpop.f32.mrf.mxu0
      %v801 = vadd.f32 0.0, %v800
      %v802 = vpop.f32.mrf.mxu0
      %803 = vmatprep.mubr.f32.mxu0 %v331
      %804 = vmatmul.mubr.f32.gmra.mxu0 %v330
      %v805 = vpop.f32.mrf.mxu0
      %v806 = vadd.f32 0.0, %v805
      %v807 = vpop.f32.mrf.mxu0
      %808 = vmatprep.mubr.f32.mxu0 %v338
      %809 = vmatmul.mubr.f32.gmra.mxu0 %v337
      %v810 = vpop.f32.mrf.mxu0
      %v811 = vadd.f32 0.0, %v810
      %v812 = vpop.f32.mrf.mxu0
      %813 = vmatprep.mubr.f32.mxu0 %v345
      %814 = vmatmul.mubr.f32.gmra.mxu0 %v344
      %v815 = vpop.f32.mrf.mxu0
      %v816 = vadd.f32 0.0, %v815
      %v817 = vpop.f32.mrf.mxu0
      %818 = vmatprep.mubr.f32.mxu0 %v352
      %819 = vmatmul.mubr.f32.gmra.mxu0 %v351
      %v820 = vpop.f32.mrf.mxu0
      %v821 = vadd.f32 0.0, %v820
      %v822 = vpop.f32.mrf.mxu0
      %823 = vmatprep.mubr.f32.mxu0 %v359
      %824 = vmatmul.mubr.f32.gmra.mxu0 %v358
      %v825 = vpop.f32.mrf.mxu0
      %v826 = vadd.f32 0.0, %v825
      %v827 = vpop.f32.mrf.mxu0
      %828 = vmatprep.mubr.f32.mxu0 %v366
      %829 = vmatmul.mubr.f32.gmra.mxu0 %v365
      %v830 = vpop.f32.mrf.mxu0
      %v831 = vadd.f32 0.0, %v830
      %v832 = vpop.f32.mrf.mxu0
      %833 = vmatprep.mubr.f32.mxu0 %v373
      %834 = vmatmul.mubr.f32.gmra.mxu0 %v372
      %v835 = vpop.f32.mrf.mxu0
      %v836 = vadd.f32 0.0, %v835
      %v837 = vpop.f32.mrf.mxu0
      %838 = vmatprep.mubr.f32.mxu0 %v380
      %839 = vmatmul.mubr.f32.gmra.mxu0 %v379
      %v840 = vpop.f32.mrf.mxu0
      %v841 = vadd.f32 0.0, %v840
      %v842 = vpop.f32.mrf.mxu0
      %843 = vmatprep.mubr.f32.mxu0 %v387
      %844 = vmatmul.mubr.f32.gmra.mxu0 %v386
      %v845 = vpop.f32.mrf.mxu0
      %v846 = vadd.f32 0.0, %v845
      %v847 = vpop.f32.mrf.mxu0
      %848 = vmatprep.mubr.f32.mxu0 %v394
      %849 = vmatmul.mubr.f32.gmra.mxu0 %v393
      %v850 = vpop.f32.mrf.mxu0
      %v851 = vadd.f32 0.0, %v850
      %v852 = vpop.f32.mrf.mxu0
      %853 = vmatprep.mubr.f32.mxu0 %v401
      %854 = vmatmul.mubr.f32.gmra.mxu0 %v400
      %v855 = vpop.f32.mrf.mxu0
      %v856 = vadd.f32 0.0, %v855
      %v857 = vpop.f32.mrf.mxu0
      %858 = vmatprep.mubr.f32.mxu0 %v408
      %859 = vmatmul.mubr.f32.gmra.mxu0 %v407
      %v860 = vpop.f32.mrf.mxu0
      %v861 = vadd.f32 0.0, %v860
      %v862 = vpop.f32.mrf.mxu0
      %863 = vmatprep.mubr.f32.mxu0 %v415
      %864 = vmatmul.mubr.f32.gmra.mxu0 %v414
      %v865 = vpop.f32.mrf.mxu0
      %v866 = vadd.f32 0.0, %v865
      %v867 = vpop.f32.mrf.mxu0
      %868 = vmatprep.mubr.f32.mxu0 %v422
      %869 = vmatmul.mubr.f32.gmra.mxu0 %v421
      %v870 = vpop.f32.mrf.mxu0
      %v871 = vadd.f32 0.0, %v870
      %v872 = vpop.f32.mrf.mxu0
      %873 = vmatprep.mubr.f32.mxu0 %v429
      %874 = vmatmul.mubr.f32.gmra.mxu0 %v428
      %v875 = vpop.f32.mrf.mxu0
      %v876 = vadd.f32 0.0, %v875
      %v877 = vpop.f32.mrf.mxu0
      %878 = vmatprep.mubr.f32.mxu0 %v436
      %879 = vmatmul.mubr.f32.gmra.mxu0 %v435
      %v880 = vpop.f32.mrf.mxu0
      %v881 = vadd.f32 0.0, %v880
      %v882 = vpop.f32.mrf.mxu0
      %883 = vmatprep.mubr.f32.mxu0 %v443
      %884 = vmatmul.mubr.f32.gmra.mxu0 %v442
      %v885 = vpop.f32.mrf.mxu0
      %v886 = vadd.f32 0.0, %v885
      %v887 = vpop.f32.mrf.mxu0
      %888 = vmatprep.mubr.f32.mxu0 %v450
      %889 = vmatmul.mubr.f32.gmra.mxu0 %v449
      %v890 = vpop.f32.mrf.mxu0
      %v891 = vadd.f32 0.0, %v890
      %v892 = vpop.f32.mrf.mxu0
      %893 = vmatprep.mubr.f32.mxu0 %v457
      %894 = vmatmul.mubr.f32.gmra.mxu0 %v456
      %v895 = vpop.f32.mrf.mxu0
      %v896 = vadd.f32 0.0, %v895
      %v897 = vpop.f32.mrf.mxu0
      %898 = vmatprep.mubr.f32.mxu0 %v464
      %899 = vmatmul.mubr.f32.gmra.mxu0 %v463
      %v900 = vpop.f32.mrf.mxu0
      %v901 = vadd.f32 0.0, %v900
      %v902 = vpop.f32.mrf.mxu0
      %903 = vmatprep.mubr.f32.mxu0 %v471
      %904 = vmatmul.mubr.f32.gmra.mxu0 %v470
      %v905 = vpop.f32.mrf.mxu0
      %v906 = vadd.f32 0.0, %v905
      %v907 = vpop.f32.mrf.mxu0
      %908 = vmatprep.mubr.f32.mxu0 %v478
      %909 = vmatmul.mubr.f32.gmra.mxu0 %v477
      %v910 = vpop.f32.mrf.mxu0
      %v911 = vadd.f32 0.0, %v910
      %v912 = vpop.f32.mrf.mxu0
      %913 = vmatprep.mubr.f32.mxu0 %v485
      %914 = vmatmul.mubr.f32.gmra.mxu0 %v484
      %v915 = vpop.f32.mrf.mxu0
      %v916 = vadd.f32 0.0, %v915
      %v917 = vpop.f32.mrf.mxu0
      %918 = vmatprep.mubr.f32.mxu0 %v492
      %919 = vmatmul.mubr.f32.gmra.mxu0 %v491
      %v920 = vpop.f32.mrf.mxu0
      %v921 = vadd.f32 0.0, %v920
      %v922 = vpop.f32.mrf.mxu0
      %923 = vmatprep.mubr.f32.mxu0 %v499
      %924 = vmatmul.mubr.f32.gmra.mxu0 %v498
      %v925 = vpop.f32.mrf.mxu0
      %v926 = vadd.f32 0.0, %v925
      %v927 = vpop.f32.mrf.mxu0
      %928 = vmatprep.mubr.f32.mxu0 %v506
      %929 = vmatmul.mubr.f32.gmra.mxu0 %v505
      %v930 = vpop.f32.mrf.mxu0
      %v931 = vadd.f32 0.0, %v930
      %v932 = vpop.f32.mrf.mxu0
      %933 = vmatprep.mubr.f32.mxu0 %v513
      %934 = vmatmul.mubr.f32.gmra.mxu0 %v512
      %v935 = vpop.f32.mrf.mxu0
      %v936 = vadd.f32 0.0, %v935
      %v937 = vpop.f32.mrf.mxu0
      %938 = vdwg.mxu0
      %939 = vmatprep.subr.mxu0 0.0
      %940 = vmatpush1.msra.mxu0 %v566
      %941 = vmatprep.subr.mxu0 0.0
      %942 = vmatpush1.msra.mxu0 %v565
      %943 = vmatprep.subr.mxu0 0.0
      %944 = vmatpush1.msra.mxu0 %v564
      %945 = vmatprep.subr.mxu0 0.0
      %946 = vmatpush1.msra.mxu0 %v563
      %947 = vmatprep.subr.mxu0 0.0
      %948 = vmatpush1.msra.mxu0 %v562
      %949 = vmatprep.subr.mxu0 0.0
      %950 = vmatpush1.msra.mxu0 %v561
      %951 = vmatprep.subr.mxu0 0.0
      %952 = vmatpush1.msra.mxu0 %v560
      %953 = vmatprep.subr.mxu0 0.0
      %954 = vmatpush1.msra.mxu0 %v559
      %955 = vmatprep.subr.mxu0 0.0
      %956 = vmatpush1.msra.mxu0 %v558
      %957 = vmatprep.subr.mxu0 0.0
      %958 = vmatpush1.msra.mxu0 %v557
      %959 = vmatprep.subr.mxu0 0.0
      %960 = vmatpush1.msra.mxu0 %v556
      %961 = vmatprep.subr.mxu0 0.0
      %962 = vmatpush1.msra.mxu0 %v555
      %963 = vmatprep.subr.mxu0 0.0
      %964 = vmatpush1.msra.mxu0 %v554
      %965 = vmatprep.subr.mxu0 0.0
      %966 = vmatpush1.msra.mxu0 %v553
      %967 = vmatprep.subr.mxu0 0.0
      %968 = vmatpush1.msra.mxu0 %v552
      %969 = vmatprep.subr.mxu0 0.0
      %970 = vmatpush1.msra.mxu0 %v551
      %971 = vmatprep.subr.mxu0 0.0
      %972 = vmatpush2.msra.mxu0 %v582
      %973 = vmatprep.subr.mxu0 0.0
      %974 = vmatpush2.msra.mxu0 %v581
      %975 = vmatprep.subr.mxu0 0.0
      %976 = vmatpush2.msra.mxu0 %v580
      %977 = vmatprep.subr.mxu0 0.0
      %978 = vmatpush2.msra.mxu0 %v579
      %979 = vmatprep.subr.mxu0 0.0
      %980 = vmatpush2.msra.mxu0 %v578
      %981 = vmatprep.subr.mxu0 0.0
      %982 = vmatpush2.msra.mxu0 %v577
      %983 = vmatprep.subr.mxu0 0.0
      %984 = vmatpush2.msra.mxu0 %v576
      %985 = vmatprep.subr.mxu0 0.0
      %986 = vmatpush2.msra.mxu0 %v575
      %987 = vmatprep.subr.mxu0 0.0
      %988 = vmatpush2.msra.mxu0 %v574
      %989 = vmatprep.subr.mxu0 0.0
      %990 = vmatpush2.msra.mxu0 %v573
      %991 = vmatprep.subr.mxu0 0.0
      %992 = vmatpush2.msra.mxu0 %v572
      %993 = vmatprep.subr.mxu0 0.0
      %994 = vmatpush2.msra.mxu0 %v571
      %995 = vmatprep.subr.mxu0 0.0
      %996 = vmatpush2.msra.mxu0 %v570
      %997 = vmatprep.subr.mxu0 0.0
      %998 = vmatpush2.msra.mxu0 %v569
      %999 = vmatprep.subr.mxu0 0.0
      %1000 = vmatpush2.msra.mxu0 %v568
      %1001 = vmatprep.subr.mxu0 0.0
      %1002 = vmatpush2.msra.mxu0 %v567
      %1003 = vmatprep.mubr.f32.mxu0 %v298
      %1004 = vmatmul.mubr.f32.gmra.mxu0 %v297
      %v1005 = vpop.f32.mrf.mxu0
      %v1006 = vadd.f32 %v781, %v1005
      %v1007 = vpop.f32.mrf.mxu0
      %1008 = vmatprep.mubr.f32.mxu0 %v305
      %1009 = vmatmul.mubr.f32.gmra.mxu0 %v304
      %v1010 = vpop.f32.mrf.mxu0
      %v1011 = vadd.f32 %v786, %v1010
      %v1012 = vpop.f32.mrf.mxu0
      %1013 = vmatprep.mubr.f32.mxu0 %v312
      %1014 = vmatmul.mubr.f32.gmra.mxu0 %v311
      %v1015 = vpop.f32.mrf.mxu0
      %v1016 = vadd.f32 %v791, %v1015
      %v1017 = vpop.f32.mrf.mxu0
      %1018 = vmatprep.mubr.f32.mxu0 %v319
      %1019 = vmatmul.mubr.f32.gmra.mxu0 %v318
      %v1020 = vpop.f32.mrf.mxu0
      %v1021 = vadd.f32 %v796, %v1020
      %v1022 = vpop.f32.mrf.mxu0
      %1023 = vmatprep.mubr.f32.mxu0 %v326
      %1024 = vmatmul.mubr.f32.gmra.mxu0 %v325
      %v1025 = vpop.f32.mrf.mxu0
      %v1026 = vadd.f32 %v801, %v1025
      %v1027 = vpop.f32.mrf.mxu0
      %1028 = vmatprep.mubr.f32.mxu0 %v333
      %1029 = vmatmul.mubr.f32.gmra.mxu0 %v332
      %v1030 = vpop.f32.mrf.mxu0
      %v1031 = vadd.f32 %v806, %v1030
      %v1032 = vpop.f32.mrf.mxu0
      %1033 = vmatprep.mubr.f32.mxu0 %v340
      %1034 = vmatmul.mubr.f32.gmra.mxu0 %v339
      %v1035 = vpop.f32.mrf.mxu0
      %v1036 = vadd.f32 %v811, %v1035
      %v1037 = vpop.f32.mrf.mxu0
      %1038 = vmatprep.mubr.f32.mxu0 %v347
      %1039 = vmatmul.mubr.f32.gmra.mxu0 %v346
      %v1040 = vpop.f32.mrf.mxu0
      %v1041 = vadd.f32 %v816, %v1040
      %v1042 = vpop.f32.mrf.mxu0
      %1043 = vmatprep.mubr.f32.mxu0 %v354
      %1044 = vmatmul.mubr.f32.gmra.mxu0 %v353
      %v1045 = vpop.f32.mrf.mxu0
      %v1046 = vadd.f32 %v821, %v1045
      %v1047 = vpop.f32.mrf.mxu0
      %1048 = vmatprep.mubr.f32.mxu0 %v361
      %1049 = vmatmul.mubr.f32.gmra.mxu0 %v360
      %v1050 = vpop.f32.mrf.mxu0
      %v1051 = vadd.f32 %v826, %v1050
      %v1052 = vpop.f32.mrf.mxu0
      %1053 = vmatprep.mubr.f32.mxu0 %v368
      %1054 = vmatmul.mubr.f32.gmra.mxu0 %v367
      %v1055 = vpop.f32.mrf.mxu0
      %v1056 = vadd.f32 %v831, %v1055
      %v1057 = vpop.f32.mrf.mxu0
      %1058 = vmatprep.mubr.f32.mxu0 %v375
      %1059 = vmatmul.mubr.f32.gmra.mxu0 %v374
      %v1060 = vpop.f32.mrf.mxu0
      %v1061 = vadd.f32 %v836, %v1060
      %v1062 = vpop.f32.mrf.mxu0
      %1063 = vmatprep.mubr.f32.mxu0 %v382
      %1064 = vmatmul.mubr.f32.gmra.mxu0 %v381
      %v1065 = vpop.f32.mrf.mxu0
      %v1066 = vadd.f32 %v841, %v1065
      %v1067 = vpop.f32.mrf.mxu0
      %1068 = vmatprep.mubr.f32.mxu0 %v389
      %1069 = vmatmul.mubr.f32.gmra.mxu0 %v388
      %v1070 = vpop.f32.mrf.mxu0
      %v1071 = vadd.f32 %v846, %v1070
      %v1072 = vpop.f32.mrf.mxu0
      %1073 = vmatprep.mubr.f32.mxu0 %v396
      %1074 = vmatmul.mubr.f32.gmra.mxu0 %v395
      %v1075 = vpop.f32.mrf.mxu0
      %v1076 = vadd.f32 %v851, %v1075
      %v1077 = vpop.f32.mrf.mxu0
      %1078 = vmatprep.mubr.f32.mxu0 %v403
      %1079 = vmatmul.mubr.f32.gmra.mxu0 %v402
      %v1080 = vpop.f32.mrf.mxu0
      %v1081 = vadd.f32 %v856, %v1080
      %v1082 = vpop.f32.mrf.mxu0
      %1083 = vmatprep.mubr.f32.mxu0 %v410
      %1084 = vmatmul.mubr.f32.gmra.mxu0 %v409
      %v1085 = vpop.f32.mrf.mxu0
      %v1086 = vadd.f32 %v861, %v1085
      %v1087 = vpop.f32.mrf.mxu0
      %1088 = vmatprep.mubr.f32.mxu0 %v417
      %1089 = vmatmul.mubr.f32.gmra.mxu0 %v416
      %v1090 = vpop.f32.mrf.mxu0
      %v1091 = vadd.f32 %v866, %v1090
      %v1092 = vpop.f32.mrf.mxu0
      %1093 = vmatprep.mubr.f32.mxu0 %v424
      %1094 = vmatmul.mubr.f32.gmra.mxu0 %v423
      %v1095 = vpop.f32.mrf.mxu0
      %v1096 = vadd.f32 %v871, %v1095
      %v1097 = vpop.f32.mrf.mxu0
      %1098 = vmatprep.mubr.f32.mxu0 %v431
      %1099 = vmatmul.mubr.f32.gmra.mxu0 %v430
      %v1100 = vpop.f32.mrf.mxu0
      %v1101 = vadd.f32 %v876, %v1100
      %v1102 = vpop.f32.mrf.mxu0
      %1103 = vmatprep.mubr.f32.mxu0 %v438
      %1104 = vmatmul.mubr.f32.gmra.mxu0 %v437
      %v1105 = vpop.f32.mrf.mxu0
      %v1106 = vadd.f32 %v881, %v1105
      %v1107 = vpop.f32.mrf.mxu0
      %1108 = vmatprep.mubr.f32.mxu0 %v445
      %1109 = vmatmul.mubr.f32.gmra.mxu0 %v444
      %v1110 = vpop.f32.mrf.mxu0
      %v1111 = vadd.f32 %v886, %v1110
      %v1112 = vpop.f32.mrf.mxu0
      %1113 = vmatprep.mubr.f32.mxu0 %v452
      %1114 = vmatmul.mubr.f32.gmra.mxu0 %v451
      %v1115 = vpop.f32.mrf.mxu0
      %v1116 = vadd.f32 %v891, %v1115
      %v1117 = vpop.f32.mrf.mxu0
      %1118 = vmatprep.mubr.f32.mxu0 %v459
      %1119 = vmatmul.mubr.f32.gmra.mxu0 %v458
      %v1120 = vpop.f32.mrf.mxu0
      %v1121 = vadd.f32 %v896, %v1120
      %v1122 = vpop.f32.mrf.mxu0
      %1123 = vmatprep.mubr.f32.mxu0 %v466
      %1124 = vmatmul.mubr.f32.gmra.mxu0 %v465
      %v1125 = vpop.f32.mrf.mxu0
      %v1126 = vadd.f32 %v901, %v1125
      %v1127 = vpop.f32.mrf.mxu0
      %1128 = vmatprep.mubr.f32.mxu0 %v473
      %1129 = vmatmul.mubr.f32.gmra.mxu0 %v472
      %v1130 = vpop.f32.mrf.mxu0
      %v1131 = vadd.f32 %v906, %v1130
      %v1132 = vpop.f32.mrf.mxu0
      %1133 = vmatprep.mubr.f32.mxu0 %v480
      %1134 = vmatmul.mubr.f32.gmra.mxu0 %v479
      %v1135 = vpop.f32.mrf.mxu0
      %v1136 = vadd.f32 %v911, %v1135
      %v1137 = vpop.f32.mrf.mxu0
      %1138 = vmatprep.mubr.f32.mxu0 %v487
      %1139 = vmatmul.mubr.f32.gmra.mxu0 %v486
      %v1140 = vpop.f32.mrf.mxu0
      %v1141 = vadd.f32 %v916, %v1140
      %v1142 = vpop.f32.mrf.mxu0
      %1143 = vmatprep.mubr.f32.mxu0 %v494
      %1144 = vmatmul.mubr.f32.gmra.mxu0 %v493
      %v1145 = vpop.f32.mrf.mxu0
      %v1146 = vadd.f32 %v921, %v1145
      %v1147 = vpop.f32.mrf.mxu0
      %1148 = vmatprep.mubr.f32.mxu0 %v501
      %1149 = vmatmul.mubr.f32.gmra.mxu0 %v500
      %v1150 = vpop.f32.mrf.mxu0
      %v1151 = vadd.f32 %v926, %v1150
      %v1152 = vpop.f32.mrf.mxu0
      %1153 = vmatprep.mubr.f32.mxu0 %v508
      %1154 = vmatmul.mubr.f32.gmra.mxu0 %v507
      %v1155 = vpop.f32.mrf.mxu0
      %v1156 = vadd.f32 %v931, %v1155
      %v1157 = vpop.f32.mrf.mxu0
      %1158 = vmatprep.mubr.f32.mxu0 %v515
      %1159 = vmatmul.mubr.f32.gmra.mxu0 %v514
      %v1160 = vpop.f32.mrf.mxu0
      %v1161 = vadd.f32 %v936, %v1160
      %v1162 = vpop.f32.mrf.mxu0
      %1163 = vdwg.mxu0
      %1164 = vmatprep.subr.mxu0 0.0
      %1165 = vmatpush1.msra.mxu0 %v598
      %1166 = vmatprep.subr.mxu0 0.0
      %1167 = vmatpush1.msra.mxu0 %v597
      %1168 = vmatprep.subr.mxu0 0.0
      %1169 = vmatpush1.msra.mxu0 %v596
      %1170 = vmatprep.subr.mxu0 0.0
      %1171 = vmatpush1.msra.mxu0 %v595
      %1172 = vmatprep.subr.mxu0 0.0
      %1173 = vmatpush1.msra.mxu0 %v594
      %1174 = vmatprep.subr.mxu0 0.0
      %1175 = vmatpush1.msra.mxu0 %v593
      %1176 = vmatprep.subr.mxu0 0.0
      %1177 = vmatpush1.msra.mxu0 %v592
      %1178 = vmatprep.subr.mxu0 0.0
      %1179 = vmatpush1.msra.mxu0 %v591
      %1180 = vmatprep.subr.mxu0 0.0
      %1181 = vmatpush1.msra.mxu0 %v590
      %1182 = vmatprep.subr.mxu0 0.0
      %1183 = vmatpush1.msra.mxu0 %v589
      %1184 = vmatprep.subr.mxu0 0.0
      %1185 = vmatpush1.msra.mxu0 %v588
      %1186 = vmatprep.subr.mxu0 0.0
      %1187 = vmatpush1.msra.mxu0 %v587
      %1188 = vmatprep.subr.mxu0 0.0
      %1189 = vmatpush1.msra.mxu0 %v586
      %1190 = vmatprep.subr.mxu0 0.0
      %1191 = vmatpush1.msra.mxu0 %v585
      %1192 = vmatprep.subr.mxu0 0.0
      %1193 = vmatpush1.msra.mxu0 %v584
      %1194 = vmatprep.subr.mxu0 0.0
      %1195 = vmatpush1.msra.mxu0 %v583
      %1196 = vmatprep.subr.mxu0 0.0
      %1197 = vmatpush2.msra.mxu0 %v614
      %1198 = vmatprep.subr.mxu0 0.0
      %1199 = vmatpush2.msra.mxu0 %v613
      %1200 = vmatprep.subr.mxu0 0.0
      %1201 = vmatpush2.msra.mxu0 %v612
      %1202 = vmatprep.subr.mxu0 0.0
      %1203 = vmatpush2.msra.mxu0 %v611
      %1204 = vmatprep.subr.mxu0 0.0
      %1205 = vmatpush2.msra.mxu0 %v610
      %1206 = vmatprep.subr.mxu0 0.0
      %1207 = vmatpush2.msra.mxu0 %v609
      %1208 = vmatprep.subr.mxu0 0.0
      %1209 = vmatpush2.msra.mxu0 %v608
      %1210 = vmatprep.subr.mxu0 0.0
      %1211 = vmatpush2.msra.mxu0 %v607
      %1212 = vmatprep.subr.mxu0 0.0
      %1213 = vmatpush2.msra.mxu0 %v606
      %1214 = vmatprep.subr.mxu0 0.0
      %1215 = vmatpush2.msra.mxu0 %v605
      %1216 = vmatprep.subr.mxu0 0.0
      %1217 = vmatpush2.msra.mxu0 %v604
      %1218 = vmatprep.subr.mxu0 0.0
      %1219 = vmatpush2.msra.mxu0 %v603
      %1220 = vmatprep.subr.mxu0 0.0
      %1221 = vmatpush2.msra.mxu0 %v602
      %1222 = vmatprep.subr.mxu0 0.0
      %1223 = vmatpush2.msra.mxu0 %v601
      %1224 = vmatprep.subr.mxu0 0.0
      %1225 = vmatpush2.msra.mxu0 %v600
      %1226 = vmatprep.subr.mxu0 0.0
      %1227 = vmatpush2.msra.mxu0 %v599
      %1228 = vmatprep.mubr.f32.mxu0 %v300
      %1229 = vmatmul.mubr.f32.gmra.mxu0 %v299
      %v1230 = vpop.f32.mrf.mxu0
      %v1231 = vadd.f32 %v1006, %v1230
      %v1232 = vpop.f32.mrf.mxu0
      %1233 = vmatprep.mubr.f32.mxu0 %v307
      %1234 = vmatmul.mubr.f32.gmra.mxu0 %v306
      %v1235 = vpop.f32.mrf.mxu0
      %v1236 = vadd.f32 %v1011, %v1235
      %v1237 = vpop.f32.mrf.mxu0
      %1238 = vmatprep.mubr.f32.mxu0 %v314
      %1239 = vmatmul.mubr.f32.gmra.mxu0 %v313
      %v1240 = vpop.f32.mrf.mxu0
      %v1241 = vadd.f32 %v1016, %v1240
      %v1242 = vpop.f32.mrf.mxu0
      %1243 = vmatprep.mubr.f32.mxu0 %v321
      %1244 = vmatmul.mubr.f32.gmra.mxu0 %v320
      %v1245 = vpop.f32.mrf.mxu0
      %v1246 = vadd.f32 %v1021, %v1245
      %v1247 = vpop.f32.mrf.mxu0
      %1248 = vmatprep.mubr.f32.mxu0 %v328
      %1249 = vmatmul.mubr.f32.gmra.mxu0 %v327
      %v1250 = vpop.f32.mrf.mxu0
      %v1251 = vadd.f32 %v1026, %v1250
      %v1252 = vpop.f32.mrf.mxu0
      %1253 = vmatprep.mubr.f32.mxu0 %v335
      %1254 = vmatmul.mubr.f32.gmra.mxu0 %v334
      %v1255 = vpop.f32.mrf.mxu0
      %v1256 = vadd.f32 %v1031, %v1255
      %v1257 = vpop.f32.mrf.mxu0
      %1258 = vmatprep.mubr.f32.mxu0 %v342
      %1259 = vmatmul.mubr.f32.gmra.mxu0 %v341
      %v1260 = vpop.f32.mrf.mxu0
      %v1261 = vadd.f32 %v1036, %v1260
      %v1262 = vpop.f32.mrf.mxu0
      %1263 = vmatprep.mubr.f32.mxu0 %v349
      %1264 = vmatmul.mubr.f32.gmra.mxu0 %v348
      %v1265 = vpop.f32.mrf.mxu0
      %v1266 = vadd.f32 %v1041, %v1265
      %v1267 = vpop.f32.mrf.mxu0
      %1268 = vmatprep.mubr.f32.mxu0 %v356
      %1269 = vmatmul.mubr.f32.gmra.mxu0 %v355
      %v1270 = vpop.f32.mrf.mxu0
      %v1271 = vadd.f32 %v1046, %v1270
      %v1272 = vpop.f32.mrf.mxu0
      %1273 = vmatprep.mubr.f32.mxu0 %v363
      %1274 = vmatmul.mubr.f32.gmra.mxu0 %v362
      %v1275 = vpop.f32.mrf.mxu0
      %v1276 = vadd.f32 %v1051, %v1275
      %v1277 = vpop.f32.mrf.mxu0
      %1278 = vmatprep.mubr.f32.mxu0 %v370
      %1279 = vmatmul.mubr.f32.gmra.mxu0 %v369
      %v1280 = vpop.f32.mrf.mxu0
      %v1281 = vadd.f32 %v1056, %v1280
      %v1282 = vpop.f32.mrf.mxu0
      %1283 = vmatprep.mubr.f32.mxu0 %v377
      %1284 = vmatmul.mubr.f32.gmra.mxu0 %v376
      %v1285 = vpop.f32.mrf.mxu0
      %v1286 = vadd.f32 %v1061, %v1285
      %v1287 = vpop.f32.mrf.mxu0
      %1288 = vmatprep.mubr.f32.mxu0 %v384
      %1289 = vmatmul.mubr.f32.gmra.mxu0 %v383
      %v1290 = vpop.f32.mrf.mxu0
      %v1291 = vadd.f32 %v1066, %v1290
      %v1292 = vpop.f32.mrf.mxu0
      %1293 = vmatprep.mubr.f32.mxu0 %v391
      %1294 = vmatmul.mubr.f32.gmra.mxu0 %v390
      %v1295 = vpop.f32.mrf.mxu0
      %v1296 = vadd.f32 %v1071, %v1295
      %v1297 = vpop.f32.mrf.mxu0
      %1298 = vmatprep.mubr.f32.mxu0 %v398
      %1299 = vmatmul.mubr.f32.gmra.mxu0 %v397
      %v1300 = vpop.f32.mrf.mxu0
      %v1301 = vadd.f32 %v1076, %v1300
      %v1302 = vpop.f32.mrf.mxu0
      %1303 = vmatprep.mubr.f32.mxu0 %v405
      %1304 = vmatmul.mubr.f32.gmra.mxu0 %v404
      %v1305 = vpop.f32.mrf.mxu0
      %v1306 = vadd.f32 %v1081, %v1305
      %v1307 = vpop.f32.mrf.mxu0
      %1308 = vmatprep.mubr.f32.mxu0 %v412
      %1309 = vmatmul.mubr.f32.gmra.mxu0 %v411
      %v1310 = vpop.f32.mrf.mxu0
      %v1311 = vadd.f32 %v1086, %v1310
      %v1312 = vpop.f32.mrf.mxu0
      %1313 = vmatprep.mubr.f32.mxu0 %v419
      %1314 = vmatmul.mubr.f32.gmra.mxu0 %v418
      %v1315 = vpop.f32.mrf.mxu0
      %v1316 = vadd.f32 %v1091, %v1315
      %v1317 = vpop.f32.mrf.mxu0
      %1318 = vmatprep.mubr.f32.mxu0 %v426
      %1319 = vmatmul.mubr.f32.gmra.mxu0 %v425
      %v1320 = vpop.f32.mrf.mxu0
      %v1321 = vadd.f32 %v1096, %v1320
      %v1322 = vpop.f32.mrf.mxu0
      %1323 = vmatprep.mubr.f32.mxu0 %v433
      %1324 = vmatmul.mubr.f32.gmra.mxu0 %v432
      %v1325 = vpop.f32.mrf.mxu0
      %v1326 = vadd.f32 %v1101, %v1325
      %v1327 = vpop.f32.mrf.mxu0
      %1328 = vmatprep.mubr.f32.mxu0 %v440
      %1329 = vmatmul.mubr.f32.gmra.mxu0 %v439
      %v1330 = vpop.f32.mrf.mxu0
      %v1331 = vadd.f32 %v1106, %v1330
      %v1332 = vpop.f32.mrf.mxu0
      %1333 = vmatprep.mubr.f32.mxu0 %v447
      %1334 = vmatmul.mubr.f32.gmra.mxu0 %v446
      %v1335 = vpop.f32.mrf.mxu0
      %v1336 = vadd.f32 %v1111, %v1335
      %v1337 = vpop.f32.mrf.mxu0
      %1338 = vmatprep.mubr.f32.mxu0 %v454
      %1339 = vmatmul.mubr.f32.gmra.mxu0 %v453
      %v1340 = vpop.f32.mrf.mxu0
      %v1341 = vadd.f32 %v1116, %v1340
      %v1342 = vpop.f32.mrf.mxu0
      %1343 = vmatprep.mubr.f32.mxu0 %v461
      %1344 = vmatmul.mubr.f32.gmra.mxu0 %v460
      %v1345 = vpop.f32.mrf.mxu0
      %v1346 = vadd.f32 %v1121, %v1345
      %v1347 = vpop.f32.mrf.mxu0
      %1348 = vmatprep.mubr.f32.mxu0 %v468
      %1349 = vmatmul.mubr.f32.gmra.mxu0 %v467
      %v1350 = vpop.f32.mrf.mxu0
      %v1351 = vadd.f32 %v1126, %v1350
      %v1352 = vpop.f32.mrf.mxu0
      %1353 = vmatprep.mubr.f32.mxu0 %v475
      %1354 = vmatmul.mubr.f32.gmra.mxu0 %v474
      %v1355 = vpop.f32.mrf.mxu0
      %v1356 = vadd.f32 %v1131, %v1355
      %v1357 = vpop.f32.mrf.mxu0
      %1358 = vmatprep.mubr.f32.mxu0 %v482
      %1359 = vmatmul.mubr.f32.gmra.mxu0 %v481
      %v1360 = vpop.f32.mrf.mxu0
      %v1361 = vadd.f32 %v1136, %v1360
      %v1362 = vpop.f32.mrf.mxu0
      %1363 = vmatprep.mubr.f32.mxu0 %v489
      %1364 = vmatmul.mubr.f32.gmra.mxu0 %v488
      %v1365 = vpop.f32.mrf.mxu0
      %v1366 = vadd.f32 %v1141, %v1365
      %v1367 = vpop.f32.mrf.mxu0
      %1368 = vmatprep.mubr.f32.mxu0 %v496
      %1369 = vmatmul.mubr.f32.gmra.mxu0 %v495
      %v1370 = vpop.f32.mrf.mxu0
      %v1371 = vadd.f32 %v1146, %v1370
      %v1372 = vpop.f32.mrf.mxu0
      %1373 = vmatprep.mubr.f32.mxu0 %v503
      %1374 = vmatmul.mubr.f32.gmra.mxu0 %v502
      %v1375 = vpop.f32.mrf.mxu0
      %v1376 = vadd.f32 %v1151, %v1375
      %v1377 = vpop.f32.mrf.mxu0
      %1378 = vmatprep.mubr.f32.mxu0 %v510
      %1379 = vmatmul.mubr.f32.gmra.mxu0 %v509
      %v1380 = vpop.f32.mrf.mxu0
      %v1381 = vadd.f32 %v1156, %v1380
      %v1382 = vpop.f32.mrf.mxu0
      %1383 = vmatprep.mubr.f32.mxu0 %v517
      %1384 = vmatmul.mubr.f32.gmra.mxu0 %v516
      %v1385 = vpop.f32.mrf.mxu0
      %v1386 = vadd.f32 %v1161, %v1385
      %v1387 = vpop.f32.mrf.mxu0
      %1388 = vdwg.mxu0
      %1389 = vmatprep.subr.mxu0 0.0
      %1390 = vmatpush1.msra.mxu0 0.0
      %1391 = vmatprep.subr.mxu0 0.0
      %1392 = vmatpush1.msra.mxu0 0.0
      %1393 = vmatprep.subr.mxu0 0.0
      %1394 = vmatpush1.msra.mxu0 0.0
      %1395 = vmatprep.subr.mxu0 0.0
      %1396 = vmatpush1.msra.mxu0 0.0
      %1397 = vmatprep.subr.mxu0 0.0
      %1398 = vmatpush1.msra.mxu0 0.0
      %1399 = vmatprep.subr.mxu0 0.0
      %1400 = vmatpush1.msra.mxu0 0.0
      %1401 = vmatprep.subr.mxu0 0.0
      %1402 = vmatpush1.msra.mxu0 0.0
      %1403 = vmatprep.subr.mxu0 0.0
      %1404 = vmatpush1.msra.mxu0 0.0
      %1405 = vmatprep.subr.mxu0 0.0
      %1406 = vmatpush1.msra.mxu0 0.0
      %1407 = vmatprep.subr.mxu0 0.0
      %1408 = vmatpush1.msra.mxu0 0.0
      %1409 = vmatprep.subr.mxu0 0.0
      %1410 = vmatpush1.msra.mxu0 0.0
      %1411 = vmatprep.subr.mxu0 0.0
      %1412 = vmatpush1.msra.mxu0 0.0
      %1413 = vmatprep.subr.mxu0 0.0
      %1414 = vmatpush1.msra.mxu0 0.0
      %1415 = vmatprep.subr.mxu0 0.0
      %1416 = vmatpush1.msra.mxu0 0.0
      %1417 = vmatprep.subr.mxu0 0.0
      %1418 = vmatpush1.msra.mxu0 %v616
      %1419 = vmatprep.subr.mxu0 0.0
      %1420 = vmatpush1.msra.mxu0 %v615
      %1421 = vmatprep.subr.mxu0 0.0
      %1422 = vmatpush2.msra.mxu0 0.0
      %1423 = vmatprep.subr.mxu0 0.0
      %1424 = vmatpush2.msra.mxu0 0.0
      %1425 = vmatprep.subr.mxu0 0.0
      %1426 = vmatpush2.msra.mxu0 0.0
      %1427 = vmatprep.subr.mxu0 0.0
      %1428 = vmatpush2.msra.mxu0 0.0
      %1429 = vmatprep.subr.mxu0 0.0
      %1430 = vmatpush2.msra.mxu0 0.0
      %1431 = vmatprep.subr.mxu0 0.0
      %1432 = vmatpush2.msra.mxu0 0.0
      %1433 = vmatprep.subr.mxu0 0.0
      %1434 = vmatpush2.msra.mxu0 0.0
      %1435 = vmatprep.subr.mxu0 0.0
      %1436 = vmatpush2.msra.mxu0 0.0
      %1437 = vmatprep.subr.mxu0 0.0
      %1438 = vmatpush2.msra.mxu0 0.0
      %1439 = vmatprep.subr.mxu0 0.0
      %1440 = vmatpush2.msra.mxu0 0.0
      %1441 = vmatprep.subr.mxu0 0.0
      %1442 = vmatpush2.msra.mxu0 0.0
      %1443 = vmatprep.subr.mxu0 0.0
      %1444 = vmatpush2.msra.mxu0 0.0
      %1445 = vmatprep.subr.mxu0 0.0
      %1446 = vmatpush2.msra.mxu0 0.0
      %1447 = vmatprep.subr.mxu0 0.0
      %1448 = vmatpush2.msra.mxu0 0.0
      %1449 = vmatprep.subr.mxu0 0.0
      %1450 = vmatpush2.msra.mxu0 0.0
      %1451 = vmatprep.subr.mxu0 0.0
      %1452 = vmatpush2.msra.mxu0 0.0
      %1453 = vmatprep.mubr.f32.mxu0 0.0
      %1454 = vmatmul.mubr.f32.gmra.mxu0 %v619
      %v1455 = vpop.f32.mrf.mxu0
      %v1456 = vadd.f32 %v1231, %v1455
      %v1457 = vpop.f32.mrf.mxu0
      %1458 = vmatprep.mubr.f32.mxu0 0.0
      %1459 = vmatmul.mubr.f32.gmra.mxu0 %v622
      %v1460 = vpop.f32.mrf.mxu0
      %v1461 = vadd.f32 %v1236, %v1460
      %v1462 = vpop.f32.mrf.mxu0
      %1463 = vmatprep.mubr.f32.mxu0 0.0
      %1464 = vmatmul.mubr.f32.gmra.mxu0 %v625
      %v1465 = vpop.f32.mrf.mxu0
      %v1466 = vadd.f32 %v1241, %v1465
      %v1467 = vpop.f32.mrf.mxu0
      %1468 = vmatprep.mubr.f32.mxu0 0.0
      %1469 = vmatmul.mubr.f32.gmra.mxu0 %v628
      %v1470 = vpop.f32.mrf.mxu0
      %v1471 = vadd.f32 %v1246, %v1470
      %v1472 = vpop.f32.mrf.mxu0
      %1473 = vmatprep.mubr.f32.mxu0 0.0
      %1474 = vmatmul.mubr.f32.gmra.mxu0 %v631
      %v1475 = vpop.f32.mrf.mxu0
      %v1476 = vadd.f32 %v1251, %v1475
      %v1477 = vpop.f32.mrf.mxu0
      %1478 = vmatprep.mubr.f32.mxu0 0.0
      %1479 = vmatmul.mubr.f32.gmra.mxu0 %v634
      %v1480 = vpop.f32.mrf.mxu0
      %v1481 = vadd.f32 %v1256, %v1480
      %v1482 = vpop.f32.mrf.mxu0
      %1483 = vmatprep.mubr.f32.mxu0 0.0
      %1484 = vmatmul.mubr.f32.gmra.mxu0 %v637
      %v1485 = vpop.f32.mrf.mxu0
      %v1486 = vadd.f32 %v1261, %v1485
      %v1487 = vpop.f32.mrf.mxu0
      %1488 = vmatprep.mubr.f32.mxu0 0.0
      %1489 = vmatmul.mubr.f32.gmra.mxu0 %v640
      %v1490 = vpop.f32.mrf.mxu0
      %v1491 = vadd.f32 %v1266, %v1490
      %v1492 = vpop.f32.mrf.mxu0
      %1493 = vmatprep.mubr.f32.mxu0 0.0
      %1494 = vmatmul.mubr.f32.gmra.mxu0 %v643
      %v1495 = vpop.f32.mrf.mxu0
      %v1496 = vadd.f32 %v1271, %v1495
      %v1497 = vpop.f32.mrf.mxu0
      %1498 = vmatprep.mubr.f32.mxu0 0.0
      %1499 = vmatmul.mubr.f32.gmra.mxu0 %v646
      %v1500 = vpop.f32.mrf.mxu0
      %v1501 = vadd.f32 %v1276, %v1500
      %v1502 = vpop.f32.mrf.mxu0
      %1503 = vmatprep.mubr.f32.mxu0 0.0
      %1504 = vmatmul.mubr.f32.gmra.mxu0 %v649
      %v1505 = vpop.f32.mrf.mxu0
      %v1506 = vadd.f32 %v1281, %v1505
      %v1507 = vpop.f32.mrf.mxu0
      %1508 = vmatprep.mubr.f32.mxu0 0.0
      %1509 = vmatmul.mubr.f32.gmra.mxu0 %v652
      %v1510 = vpop.f32.mrf.mxu0
      %v1511 = vadd.f32 %v1286, %v1510
      %v1512 = vpop.f32.mrf.mxu0
      %1513 = vmatprep.mubr.f32.mxu0 0.0
      %1514 = vmatmul.mubr.f32.gmra.mxu0 %v655
      %v1515 = vpop.f32.mrf.mxu0
      %v1516 = vadd.f32 %v1291, %v1515
      %v1517 = vpop.f32.mrf.mxu0
      %1518 = vmatprep.mubr.f32.mxu0 0.0
      %1519 = vmatmul.mubr.f32.gmra.mxu0 %v658
      %v1520 = vpop.f32.mrf.mxu0
      %v1521 = vadd.f32 %v1296, %v1520
      %v1522 = vpop.f32.mrf.mxu0
      %1523 = vmatprep.mubr.f32.mxu0 0.0
      %1524 = vmatmul.mubr.f32.gmra.mxu0 %v661
      %v1525 = vpop.f32.mrf.mxu0
      %v1526 = vadd.f32 %v1301, %v1525
      %v1527 = vpop.f32.mrf.mxu0
      %1528 = vmatprep.mubr.f32.mxu0 0.0
      %1529 = vmatmul.mubr.f32.gmra.mxu0 %v664
      %v1530 = vpop.f32.mrf.mxu0
      %v1531 = vadd.f32 %v1306, %v1530
      %v1532 = vpop.f32.mrf.mxu0
      %1533 = vmatprep.mubr.f32.mxu0 0.0
      %1534 = vmatmul.mubr.f32.gmra.mxu0 %v667
      %v1535 = vpop.f32.mrf.mxu0
      %v1536 = vadd.f32 %v1311, %v1535
      %v1537 = vpop.f32.mrf.mxu0
      %1538 = vmatprep.mubr.f32.mxu0 0.0
      %1539 = vmatmul.mubr.f32.gmra.mxu0 %v670
      %v1540 = vpop.f32.mrf.mxu0
      %v1541 = vadd.f32 %v1316, %v1540
      %v1542 = vpop.f32.mrf.mxu0
      %1543 = vmatprep.mubr.f32.mxu0 0.0
      %1544 = vmatmul.mubr.f32.gmra.mxu0 %v673
      %v1545 = vpop.f32.mrf.mxu0
      %v1546 = vadd.f32 %v1321, %v1545
      %v1547 = vpop.f32.mrf.mxu0
      %1548 = vmatprep.mubr.f32.mxu0 0.0
      %1549 = vmatmul.mubr.f32.gmra.mxu0 %v676
      %v1550 = vpop.f32.mrf.mxu0
      %v1551 = vadd.f32 %v1326, %v1550
      %v1552 = vpop.f32.mrf.mxu0
      %1553 = vmatprep.mubr.f32.mxu0 0.0
      %1554 = vmatmul.mubr.f32.gmra.mxu0 %v679
      %v1555 = vpop.f32.mrf.mxu0
      %v1556 = vadd.f32 %v1331, %v1555
      %v1557 = vpop.f32.mrf.mxu0
      %1558 = vmatprep.mubr.f32.mxu0 0.0
      %1559 = vmatmul.mubr.f32.gmra.mxu0 %v682
      %v1560 = vpop.f32.mrf.mxu0
      %v1561 = vadd.f32 %v1336, %v1560
      %v1562 = vpop.f32.mrf.mxu0
      %1563 = vmatprep.mubr.f32.mxu0 0.0
      %1564 = vmatmul.mubr.f32.gmra.mxu0 %v685
      %v1565 = vpop.f32.mrf.mxu0
      %v1566 = vadd.f32 %v1341, %v1565
      %v1567 = vpop.f32.mrf.mxu0
      %1568 = vmatprep.mubr.f32.mxu0 0.0
      %1569 = vmatmul.mubr.f32.gmra.mxu0 %v688
      %v1570 = vpop.f32.mrf.mxu0
      %v1571 = vadd.f32 %v1346, %v1570
      %v1572 = vpop.f32.mrf.mxu0
      %1573 = vmatprep.mubr.f32.mxu0 0.0
      %1574 = vmatmul.mubr.f32.gmra.mxu0 %v691
      %v1575 = vpop.f32.mrf.mxu0
      %v1576 = vadd.f32 %v1351, %v1575
      %v1577 = vpop.f32.mrf.mxu0
      %1578 = vmatprep.mubr.f32.mxu0 0.0
      %1579 = vmatmul.mubr.f32.gmra.mxu0 %v694
      %v1580 = vpop.f32.mrf.mxu0
      %v1581 = vadd.f32 %v1356, %v1580
      %v1582 = vpop.f32.mrf.mxu0
      %1583 = vmatprep.mubr.f32.mxu0 0.0
      %1584 = vmatmul.mubr.f32.gmra.mxu0 %v697
      %v1585 = vpop.f32.mrf.mxu0
      %v1586 = vadd.f32 %v1361, %v1585
      %v1587 = vpop.f32.mrf.mxu0
      %1588 = vmatprep.mubr.f32.mxu0 0.0
      %1589 = vmatmul.mubr.f32.gmra.mxu0 %v700
      %v1590 = vpop.f32.mrf.mxu0
      %v1591 = vadd.f32 %v1366, %v1590
      %v1592 = vpop.f32.mrf.mxu0
      %1593 = vmatprep.mubr.f32.mxu0 0.0
      %1594 = vmatmul.mubr.f32.gmra.mxu0 %v703
      %v1595 = vpop.f32.mrf.mxu0
      %v1596 = vadd.f32 %v1371, %v1595
      %v1597 = vpop.f32.mrf.mxu0
      %1598 = vmatprep.mubr.f32.mxu0 0.0
      %1599 = vmatmul.mubr.f32.gmra.mxu0 %v706
      %v1600 = vpop.f32.mrf.mxu0
      %v1601 = vadd.f32 %v1376, %v1600
      %v1602 = vpop.f32.mrf.mxu0
      %1603 = vmatprep.mubr.f32.mxu0 0.0
      %1604 = vmatmul.mubr.f32.gmra.mxu0 %v709
      %v1605 = vpop.f32.mrf.mxu0
      %v1606 = vadd.f32 %v1381, %v1605
      %v1607 = vpop.f32.mrf.mxu0
      %1608 = vmatprep.mubr.f32.mxu0 0.0
      %1609 = vmatmul.mubr.f32.gmra.mxu0 %v712
      %v1610 = vpop.f32.mrf.mxu0
      %v1611 = vadd.f32 %v1386, %v1610
      %v1612 = vpop.f32.mrf.mxu0
      %1613 = vdwg.mxu0
      %v1614 = vadd.f32 %v263, %v1456
      %v1615 = vadd.f32 %v264, %v1461
      %v1616 = vadd.f32 %v265, %v1466
      %v1617 = vadd.f32 %v266, %v1471
      %v1618 = vadd.f32 %v267, %v1476
      %v1619 = vadd.f32 %v268, %v1481
      %v1620 = vadd.f32 %v269, %v1486
      %v1621 = vadd.f32 %v270, %v1491
      %v1622 = vadd.f32 %v271, %v1496
      %v1623 = vadd.f32 %v272, %v1501
      %v1624 = vadd.f32 %v273, %v1506
      %v1625 = vadd.f32 %v274, %v1511
      %v1626 = vadd.f32 %v275, %v1516
      %v1627 = vadd.f32 %v276, %v1521
      %v1628 = vadd.f32 %v277, %v1526
      %v1629 = vadd.f32 %v278, %v1531
      %v1630 = vadd.f32 %v279, %v1536
      %v1631 = vadd.f32 %v280, %v1541
      %v1632 = vadd.f32 %v281, %v1546
      %v1633 = vadd.f32 %v282, %v1551
      %v1634 = vadd.f32 %v283, %v1556
      %v1635 = vadd.f32 %v284, %v1561
      %v1636 = vadd.f32 %v285, %v1566
      %v1637 = vadd.f32 %v286, %v1571
      %v1638 = vadd.f32 %v287, %v1576
      %v1639 = vadd.f32 %v288, %v1581
      %v1640 = vadd.f32 %v289, %v1586
      %v1641 = vadd.f32 %v290, %v1591
      %v1642 = vadd.f32 %v291, %v1596
      %v1643 = vadd.f32 %v292, %v1601
      %v1644 = vadd.f32 %v293, %v1606
      %v1645 = vadd.f32 %v294, %v1611
      %1646 = vst [vmem:[#allocation2] sm:$0xff] %v1614
      %1647 = vst [vmem:[#allocation2 + $0x8] sm:$0xff] %v1615
      %1648 = vst [vmem:[#allocation2 + $0x10] sm:$0xff] %v1616
      %1649 = vst [vmem:[#allocation2 + $0x18] sm:$0xff] %v1617
      %1650 = vst [vmem:[#allocation2 + $0x20] sm:$0xff] %v1618
      %1651 = vst [vmem:[#allocation2 + $0x28] sm:$0xff] %v1619
      %1652 = vst [vmem:[#allocation2 + $0x30] sm:$0xff] %v1620
      %1653 = vst [vmem:[#allocation2 + $0x38] sm:$0xff] %v1621
      %1654 = vst [vmem:[#allocation2 + $0x40] sm:$0xff] %v1622
      %1655 = vst [vmem:[#allocation2 + $0x48] sm:$0xff] %v1623
      %1656 = vst [vmem:[#allocation2 + $0x50] sm:$0xff] %v1624
      %1657 = vst [vmem:[#allocation2 + $0x58] sm:$0xff] %v1625
      %1658 = vst [vmem:[#allocation2 + $0x60] sm:$0xff] %v1626
      %1659 = vst [vmem:[#allocation2 + $0x68] sm:$0xff] %v1627
      %1660 = vst [vmem:[#allocation2 + $0x70] sm:$0xff] %v1628
      %1661 = vst [vmem:[#allocation2 + $0x78] sm:$0xff] %v1629
      %1662 = vst [vmem:[#allocation2 + $0x80] sm:$0xff] %v1630
      %1663 = vst [vmem:[#allocation2 + $0x88] sm:$0xff] %v1631
      %1664 = vst [vmem:[#allocation2 + $0x90] sm:$0xff] %v1632
      %1665 = vst [vmem:[#allocation2 + $0x98] sm:$0xff] %v1633
      %1666 = vst [vmem:[#allocation2 + $0xa0] sm:$0xff] %v1634
      %1667 = vst [vmem:[#allocation2 + $0xa8] sm:$0xff] %v1635
      %1668 = vst [vmem:[#allocation2 + $0xb0] sm:$0xff] %v1636
      %1669 = vst [vmem:[#allocation2 + $0xb8] sm:$0xff] %v1637
      %1670 = vst [vmem:[#allocation2 + $0xc0] sm:$0xff] %v1638
      %1671 = vst [vmem:[#allocation2 + $0xc8] sm:$0xff] %v1639
      %1672 = vst [vmem:[#allocation2 + $0xd0] sm:$0xff] %v1640
      %1673 = vst [vmem:[#allocation2 + $0xd8] sm:$0xff] %v1641
      %1674 = vst [vmem:[#allocation2 + $0xe0] sm:$0xff] %v1642
      %1675 = vst [vmem:[#allocation2 + $0xe8] sm:$0xff] %v1643
      %1676 = vst [vmem:[#allocation2 + $0xf0] sm:$0xff] %v1644
      %1677 = vst [vmem:[#allocation2 + $0xf8] sm:$0xff] %v1645
      // Predicated region
      $region37: #{linear_classifier_forward.1} parent=31 // pred_check
        %p1678 = pneg %p227
      $region38: #{linear_classifier_forward.1} parent=31 // pred_check_branch
        %1680 = sbr.rel (%p1678) target = $region40
      $region39: #{linear_classifier_forward.1} parent=31 // pred_region
        %v1681 = vld [vmem:[#allocation2] sm:$0xff]
        %v1682 = vld [vmem:[#allocation2 + $0x8] sm:$0xff]
        %v1683 = vld [vmem:[#allocation2 + $0x10] sm:$0xff]
        %v1684 = vld [vmem:[#allocation2 + $0x18] sm:$0xff]
        %v1685 = vld [vmem:[#allocation2 + $0x20] sm:$0xff]
        %v1686 = vld [vmem:[#allocation2 + $0x28] sm:$0xff]
        %v1687 = vld [vmem:[#allocation2 + $0x30] sm:$0xff]
        %v1688 = vld [vmem:[#allocation2 + $0x38] sm:$0xff]
        %v1689 = vld [vmem:[#allocation2 + $0x40] sm:$0xff]
        %v1690 = vld [vmem:[#allocation2 + $0x48] sm:$0xff]
        %v1691 = vld [vmem:[#allocation2 + $0x50] sm:$0xff]
        %v1692 = vld [vmem:[#allocation2 + $0x58] sm:$0xff]
        %v1693 = vld [vmem:[#allocation2 + $0x60] sm:$0xff]
        %v1694 = vld [vmem:[#allocation2 + $0x68] sm:$0xff]
        %v1695 = vld [vmem:[#allocation2 + $0x70] sm:$0xff]
        %v1696 = vld [vmem:[#allocation2 + $0x78] sm:$0xff]
        %v1697 = vld [vmem:[#allocation2 + $0x80] sm:$0xff]
        %v1698 = vld [vmem:[#allocation2 + $0x88] sm:$0xff]
        %v1699 = vld [vmem:[#allocation2 + $0x90] sm:$0xff]
        %v1700 = vld [vmem:[#allocation2 + $0x98] sm:$0xff]
        %v1701 = vld [vmem:[#allocation2 + $0xa0] sm:$0xff]
        %v1702 = vld [vmem:[#allocation2 + $0xa8] sm:$0xff]
        %v1703 = vld [vmem:[#allocation2 + $0xb0] sm:$0xff]
        %v1704 = vld [vmem:[#allocation2 + $0xb8] sm:$0xff]
        %v1705 = vld [vmem:[#allocation2 + $0xc0] sm:$0xff]
        %v1706 = vld [vmem:[#allocation2 + $0xc8] sm:$0xff]
        %v1707 = vld [vmem:[#allocation2 + $0xd0] sm:$0xff]
        %v1708 = vld [vmem:[#allocation2 + $0xd8] sm:$0xff]
        %v1709 = vld [vmem:[#allocation2 + $0xe0] sm:$0xff]
        %v1710 = vld [vmem:[#allocation2 + $0xe8] sm:$0xff]
        %v1711 = vld [vmem:[#allocation2 + $0xf0] sm:$0xff]
        %v1712 = vld [vmem:[#allocation2 + $0xf8] sm:$0xff]
        %v1713 = vld [vmem:[%s2] sm:$0x1]
        %v1715 = vlaneseq
        %v1716 = vshrl.u32 %v1715, 7
        %v1717 = vsub.s32 0, %v1716
        %v1718 = vrot.slane %v1713, %v1717
        %v1720 = vadd.f32 %v1681, %v1718
        %v1721 = vadd.f32 %v1682, %v1718
        %v1722 = vadd.f32 %v1683, %v1718
        %v1723 = vadd.f32 %v1684, %v1718
        %v1724 = vadd.f32 %v1685, %v1718
        %v1725 = vadd.f32 %v1686, %v1718
        %v1726 = vadd.f32 %v1687, %v1718
        %v1727 = vadd.f32 %v1688, %v1718
        %v1728 = vadd.f32 %v1689, %v1718
        %v1729 = vadd.f32 %v1690, %v1718
        %v1730 = vadd.f32 %v1691, %v1718
        %v1731 = vadd.f32 %v1692, %v1718
        %v1732 = vadd.f32 %v1693, %v1718
        %v1733 = vadd.f32 %v1694, %v1718
        %v1734 = vadd.f32 %v1695, %v1718
        %v1735 = vadd.f32 %v1696, %v1718
        %v1736 = vadd.f32 %v1697, %v1718
        %v1737 = vadd.f32 %v1698, %v1718
        %v1738 = vadd.f32 %v1699, %v1718
        %v1739 = vadd.f32 %v1700, %v1718
        %v1740 = vadd.f32 %v1701, %v1718
        %v1741 = vadd.f32 %v1702, %v1718
        %v1742 = vadd.f32 %v1703, %v1718
        %v1743 = vadd.f32 %v1704, %v1718
        %v1744 = vadd.f32 %v1705, %v1718
        %v1745 = vadd.f32 %v1706, %v1718
        %v1746 = vadd.f32 %v1707, %v1718
        %v1747 = vadd.f32 %v1708, %v1718
        %v1748 = vadd.f32 %v1709, %v1718
        %v1749 = vadd.f32 %v1710, %v1718
        %v1750 = vadd.f32 %v1711, %v1718
        %v1751 = vadd.f32 %v1712, %v1718
        %1752 = vst [vmem:[%s225] sm:$0xff] %v1720
        %1753 = vst [vmem:[%s225 + $0x8] sm:$0xff] %v1721
        %1754 = vst [vmem:[%s225 + $0x10] sm:$0xff] %v1722
        %1755 = vst [vmem:[%s225 + $0x18] sm:$0xff] %v1723
        %1756 = vst [vmem:[%s225 + $0x20] sm:$0xff] %v1724
        %1757 = vst [vmem:[%s225 + $0x28] sm:$0xff] %v1725
        %1758 = vst [vmem:[%s225 + $0x30] sm:$0xff] %v1726
        %1759 = vst [vmem:[%s225 + $0x38] sm:$0xff] %v1727
        %1760 = vst [vmem:[%s225 + $0x40] sm:$0xff] %v1728
        %1761 = vst [vmem:[%s225 + $0x48] sm:$0xff] %v1729
        %1762 = vst [vmem:[%s225 + $0x50] sm:$0xff] %v1730
        %1763 = vst [vmem:[%s225 + $0x58] sm:$0xff] %v1731
        %1764 = vst [vmem:[%s225 + $0x60] sm:$0xff] %v1732
        %1765 = vst [vmem:[%s225 + $0x68] sm:$0xff] %v1733
        %1766 = vst [vmem:[%s225 + $0x70] sm:$0xff] %v1734
        %1767 = vst [vmem:[%s225 + $0x78] sm:$0xff] %v1735
        %1768 = vst [vmem:[%s225 + $0x80] sm:$0xff] %v1736
        %1769 = vst [vmem:[%s225 + $0x88] sm:$0xff] %v1737
        %1770 = vst [vmem:[%s225 + $0x90] sm:$0xff] %v1738
        %1771 = vst [vmem:[%s225 + $0x98] sm:$0xff] %v1739
        %1772 = vst [vmem:[%s225 + $0xa0] sm:$0xff] %v1740
        %1773 = vst [vmem:[%s225 + $0xa8] sm:$0xff] %v1741
        %1774 = vst [vmem:[%s225 + $0xb0] sm:$0xff] %v1742
        %1775 = vst [vmem:[%s225 + $0xb8] sm:$0xff] %v1743
        %1776 = vst [vmem:[%s225 + $0xc0] sm:$0xff] %v1744
        %1777 = vst [vmem:[%s225 + $0xc8] sm:$0xff] %v1745
        %1778 = vst [vmem:[%s225 + $0xd0] sm:$0xff] %v1746
        %1779 = vst [vmem:[%s225 + $0xd8] sm:$0xff] %v1747
        %1780 = vst [vmem:[%s225 + $0xe0] sm:$0xff] %v1748
        %1781 = vst [vmem:[%s225 + $0xe8] sm:$0xff] %v1749
        %1782 = vst [vmem:[%s225 + $0xf0] sm:$0xff] %v1750
        %1783 = vst [vmem:[%s225 + $0xf8] sm:$0xff] %v1751
      $region40: #{linear_classifier_forward.1} parent=31 // pred_fallthru
        _
      %s1784 = smul.u32 32, %s18
      %p1785 = scmp.lt.s32.totalorder %s1784, 63
      %s1786 = scalar_select %p1785, %s1784, 63
      %s1787 = smul.addr %s1786, 8
      %s1788 = scalar_lea.vmem %s3, %s1787
      // Predicated region
      $region41: #{linear_classifier_forward.1} parent=31 // pred_check
        %p1789 = pneg %p119
      $region42: #{linear_classifier_forward.1} parent=31 // pred_check_branch
        %1791 = sbr.rel (%p1789) target = $region44
      $region43: #{linear_classifier_forward.1} parent=31 // pred_region
        %s1792 = smul.u32 32, %s18
      $region44: #{linear_classifier_forward.1} parent=31 // pred_fallthru
        _
    $region32: #{linear_classifier_forward.1} parent=5 // pred_fallthru
      _
    %p1793 = scmp.le.s32.totalorder 2, %s9
    // Predicated region
    $region45: #{linear_classifier_forward.1} parent=5 // pred_check
      %p1794 = pneg %p1793
    $region46: #{linear_classifier_forward.1} parent=5 // pred_check_branch
      %1796 = sbr.rel (%p1794) target = $region48
    $region47: #{linear_classifier_forward.1} parent=5 // pred_region
      %s1797 = ssub.s32 %s9, 2
      // Predicated region
      $region49: #{linear_classifier_forward.1} parent=47 // pred_check
        %p1798 = pneg %p125
      $region50: #{linear_classifier_forward.1} parent=47 // pred_check_branch
        %1800 = sbr.rel (%p1798) target = $region52
      $region51: #{linear_classifier_forward.1} parent=47 // pred_region
        %s1801 = smul.u32 32, %s20
        %p1802 = scmp.lt.s32.totalorder %s1801, 63
        %s1803 = scalar_select %p1802, %s1801, 63
        %s1804 = smul.addr %s1803, 8
        %s1805 = scalar_lea.vmem %s3, %s1804
      $region52: #{linear_classifier_forward.1} parent=47 // pred_fallthru
        _
    $region48: #{linear_classifier_forward.1} parent=5 // pred_fallthru
      _
  $region6: #{linear_classifier_forward.1} parent=0 // loop_footer
    %s13 = sadd.s32 1, %s9
  $region7: #{linear_classifier_forward.1} parent=0 // loop_footer_branch
    %8 = sbr.rel target = $region3
  $region8: #{linear_classifier_forward.1} parent=0 // loop_exit
    _

</llo_original>
